<compile_context>
chip_gen: v7x
topology: tpu7x:2x2x1
jax: 0.10.0
libtpu: 0.0.40
codegen_flags: <defaults>
</compile_context>

<pallas_src>
import functools

import jax
import jax.numpy as jnp
from jax.experimental import pallas as pl
from jax.experimental.pallas import tpu as pltpu

BN_EPS = 1e-5
LANE = 128
SUBLANE = 8
TK = 512  # K-block size for fc1


def _round_up(x, m):
    return (x + m - 1) // m * m


def plan_dims(input_dim, n_hid, out_channels):
    """Padded sizes: (k_pad, tk, hidden_pad, out_pad)."""
    if input_dim <= TK:
        k_pad = _round_up(input_dim, LANE)
        tk = k_pad
    else:
        k_pad = _round_up(input_dim, TK)
        tk = TK
    return k_pad, tk, _round_up(n_hid, LANE), _round_up(out_channels, LANE)


def _mlp_kernel(x_ref, w1_ref, b1_ref, w2_ref, b2_ref, w3_ref, b3_ref,
                w4_ref, b4_ref, gamma_ref, beta_ref, out_ref, acc_ref,
                *, n_valid_rows, n_valid_out):
    k = pl.program_id(0)

    @pl.when(k == 0)
    def _init():
        acc_ref[...] = jnp.zeros_like(acc_ref)

    # fc1, K-blocked: accumulate x_tile @ w1_tile into a resident f32 scratch.
    acc_ref[...] += jnp.dot(x_ref[...], w1_ref[...],
                            preferred_element_type=jnp.float32)

    @pl.when(k == pl.num_programs(0) - 1)
    def _finish():
        gamma = gamma_ref[...]
        beta = beta_ref[...]
        b_pad = acc_ref.shape[0]
        pad_rows = b_pad != n_valid_rows  # static

        def bn_relu(z):
            # Training-mode BatchNorm1d: batch mean, biased batch variance,
            # over the VALID rows only.  One-pass stats (E[z^2]-E[z]^2) ->
            # single cross-sublane (XLU) reduce per moment.
            if pad_rows:
                row = jax.lax.broadcasted_iota(jnp.int32, z.shape, 0)
                zm = jnp.where(row < n_valid_rows, z, 0.0)
            else:
                zm = z
            inv_n = 1.0 / n_valid_rows
            mean = jnp.sum(zm, axis=0, keepdims=True) * inv_n
            var = jnp.sum(zm * zm, axis=0, keepdims=True) * inv_n - mean * mean
            var = jnp.maximum(var, 0.0)
            zhat = (z - mean) * jax.lax.rsqrt(var + BN_EPS)
            return jnp.maximum(zhat * gamma + beta, 0.0)

        h = bn_relu(acc_ref[...] + b1_ref[...])
        h = bn_relu(jnp.dot(h, w2_ref[...], preferred_element_type=jnp.float32)
                    + b2_ref[...])
        h = bn_relu(jnp.dot(h, w3_ref[...], preferred_element_type=jnp.float32)
                    + b3_ref[...])
        logits = (jnp.dot(h, w4_ref[...], preferred_element_type=jnp.float32)
                  + b4_ref[...])

        # Mask the padded output columns to -inf so the lane-dense (128-wide)
        # log_softmax equals the unpadded one on the live columns.
        if logits.shape[1] != n_valid_out:
            col = jax.lax.broadcasted_iota(jnp.int32, logits.shape, 1)
            logits = jnp.where(col < n_valid_out, logits, -jnp.inf)

        m = jnp.max(logits, axis=1, keepdims=True)
        shifted = logits - m
        lse = jnp.log(jnp.sum(jnp.exp(shifted), axis=1, keepdims=True))
        out_ref[...] = shifted - lse


def _vmem_limit_bytes(B, tk, H, OUTP):
    f32 = 4
    dbl = 2  # BlockSpec double-buffering
    x_blk = B * tk * f32 * dbl
    w1_blk = tk * H * f32 * dbl
    resident_w = (2 * H * H + H * OUTP) * f32 * dbl    # w2, w3, w4
    small = (5 * H + OUTP) * f32 * dbl                 # biases, gamma, beta
    out_blk = B * OUTP * f32 * dbl
    acc = B * H * f32
    temps = 6 * B * max(H, OUTP) * f32                 # activations / softmax
    total = x_blk + w1_blk + resident_w + small + out_blk + acc + temps
    # generous headroom, but stay within v7x's 64 MiB physical VMEM
    return int(min(max(2 * total, total + (4 << 20)), 64 << 20))


def pack_params(params, input_dim, n_hid, out_channels):
    """One-time prep OUTSIDE the jitted forward: transpose PyTorch (out,in)
    weights to (in,out) and zero-pad everything to lane-dense padded shapes."""
    k_pad, _, H, OUTP = plan_dims(input_dim, n_hid, out_channels)

    def pad_w(w, rows, cols):  # w given as (out, in); store as (in, out)
        wt = jnp.asarray(w, jnp.float32).T
        return jnp.pad(wt, ((0, rows - wt.shape[0]), (0, cols - wt.shape[1])))

    def pad_v(v, cols, value=0.0):
        v = jnp.asarray(v, jnp.float32)[None, :]
        return jnp.pad(v, ((0, 0), (0, cols - v.shape[1])),
                       constant_values=value)

    return dict(
        w1=pad_w(params["w1"], k_pad, H), b1=pad_v(params["b1"], H),
        w2=pad_w(params["w2"], H, H),     b2=pad_v(params["b2"], H),
        w3=pad_w(params["w3"], H, H),     b3=pad_v(params["b3"], H),
        w4=pad_w(params["w4"], H, OUTP),  b4=pad_v(params["b4"], OUTP),
        gamma=pad_v(params["bn_gamma"], H, 1.0),
        beta=pad_v(params["bn_beta"], H, 0.0),
    )


@functools.partial(jax.jit,
                   static_argnames=("input_dim", "n_hid", "out_channels"))
def linear_forward(x, packed, *, input_dim, n_hid, out_channels):
    """x: (B, C, H, W) float32. Returns (B, out_channels) log-probs."""
    B = x.shape[0]
    k_pad, tk, H, OUTP = plan_dims(input_dim, n_hid, out_channels)
    B_pad = _round_up(B, SUBLANE)

    xf = x.reshape(B, -1).astype(jnp.float32)
    if k_pad != input_dim or B_pad != B:
        xf = jnp.pad(xf, ((0, B_pad - B), (0, k_pad - input_dim)))
    grid_k = k_pad // tk

    kernel = functools.partial(_mlp_kernel, n_valid_rows=B,
                               n_valid_out=out_channels)

    def vec_spec(cols):
        return pl.BlockSpec((1, cols), lambda k: (0, 0))

    out = pl.pallas_call(
        kernel,
        out_shape=jax.ShapeDtypeStruct((B_pad, OUTP), jnp.float32),
        grid_spec=pltpu.PrefetchScalarGridSpec(
            num_scalar_prefetch=0,
            grid=(grid_k,),
            in_specs=[
                pl.BlockSpec((B_pad, tk), lambda k: (0, k)),  # x (K-blocked)
                pl.BlockSpec((tk, H), lambda k: (k, 0)),      # w1 (K-blocked)
                vec_spec(H),                                  # b1
                pl.BlockSpec((H, H), lambda k: (0, 0)),       # w2 (resident)
                vec_spec(H),                                  # b2
                pl.BlockSpec((H, H), lambda k: (0, 0)),       # w3 (resident)
                vec_spec(H),                                  # b3
                pl.BlockSpec((H, OUTP), lambda k: (0, 0)),    # w4 (resident)
                vec_spec(OUTP),                               # b4
                vec_spec(H),                                  # gamma
                vec_spec(H),                                  # beta
            ],
            out_specs=pl.BlockSpec((B_pad, OUTP), lambda k: (0, 0)),
            scratch_shapes=[pltpu.VMEM((B_pad, H), jnp.float32)],
        ),
        compiler_params=pltpu.CompilerParams(
            dimension_semantics=("arbitrary",),  # K is a reduction axis
            vmem_limit_bytes=_vmem_limit_bytes(B_pad, tk, H, OUTP),
        ),
    )(xf, packed["w1"], packed["b1"], packed["w2"], packed["b2"],
      packed["w3"], packed["b3"], packed["w4"], packed["b4"],
      packed["gamma"], packed["beta"])

    return out[:B, :out_channels]


def init_params(key, in_channels, out_channels, input_size, n_hid):
    """PyTorch nn.Linear-style init: U(-1/sqrt(fan_in), 1/sqrt(fan_in))."""
    input_dim = in_channels * input_size * input_size
    dims = [(input_dim, n_hid), (n_hid, n_hid), (n_hid, n_hid),
            (n_hid, out_channels)]
    params = {}
    for i, (fan_in, fan_out) in enumerate(dims, start=1):
        key, kw, kb = jax.random.split(key, 3)
        bound = 1.0 / (fan_in ** 0.5)
        params[f"w{i}"] = jax.random.uniform(
            kw, (fan_out, fan_in), jnp.float32, minval=-bound, maxval=bound)
        params[f"b{i}"] = jax.random.uniform(
            kb, (fan_out,), jnp.float32, minval=-bound, maxval=bound)
    params["bn_gamma"] = jnp.ones((n_hid,), jnp.float32)
    params["bn_beta"] = jnp.zeros((n_hid,), jnp.float32)
    return params


def reference_forward(x, params):
    """Pure-JAX reference matching the PyTorch module (training-mode BN)."""
    B = x.shape[0]
    xf = x.reshape(B, -1).astype(jnp.float32)

    def bn_relu(z):
        mean = jnp.mean(z, axis=0, keepdims=True)
        var = jnp.mean((z - mean) ** 2, axis=0, keepdims=True)
        zhat = (z - mean) / jnp.sqrt(var + BN_EPS)
        return jnp.maximum(zhat * params["bn_gamma"] + params["bn_beta"], 0.0)

    h = bn_relu(xf @ params["w1"].T + params["b1"])
    h = bn_relu(h @ params["w2"].T + params["b2"])
    h = bn_relu(h @ params["w3"].T + params["b3"])
    logits = h @ params["w4"].T + params["b4"]
    return jax.nn.log_softmax(logits, axis=1)


if __name__ == "__main__":
    in_channels, out_channels, input_size, n_hid = 4, 10, 16, 32
    batch = 2
    input_dim = in_channels * input_size * input_size

    key = jax.random.PRNGKey(0)
    key, kx = jax.random.split(key)
    x = jax.random.normal(kx, (batch, in_channels, input_size, input_size),
                          dtype=jnp.float32)
    params = init_params(key, in_channels, out_channels, input_size, n_hid)

    packed = pack_params(params, input_dim, n_hid, out_channels)
    out = linear_forward(x, packed, input_dim=input_dim, n_hid=n_hid,
                         out_channels=out_channels)
    out = jax.block_until_ready(out)

    assert out.shape == (batch, out_channels)
    # log-probs must sum (in prob space) to ~1 per row
    assert jnp.allclose(jnp.sum(jnp.exp(out), axis=1), 1.0, atol=1e-4)
    # match pure-JAX reference of the PyTorch module
    ref = reference_forward(x, params)
    assert jnp.allclose(out, ref, atol=5e-3, rtol=5e-3)
    print("KERNEL_OK")
</pallas_src>

<mosaic_0001>
module attributes {stable_mosaic.version = 11 : i64} {
  func.func @_mlp_kernel(%arg0: i32, %arg1: memref<8x512xf32, #tpu.memory_space<vmem>>, %arg2: memref<512x128xf32, #tpu.memory_space<vmem>>, %arg3: memref<1x128xf32, #tpu.memory_space<vmem>>, %arg4: memref<128x128xf32, #tpu.memory_space<vmem>>, %arg5: memref<1x128xf32, #tpu.memory_space<vmem>>, %arg6: memref<128x128xf32, #tpu.memory_space<vmem>>, %arg7: memref<1x128xf32, #tpu.memory_space<vmem>>, %arg8: memref<128x128xf32, #tpu.memory_space<vmem>>, %arg9: memref<1x128xf32, #tpu.memory_space<vmem>>, %arg10: memref<1x128xf32, #tpu.memory_space<vmem>>, %arg11: memref<1x128xf32, #tpu.memory_space<vmem>>, %arg12: memref<8x128xf32, #tpu.memory_space<vmem>>, %arg13: memref<8x128xf32, #tpu.memory_space<vmem>>) attributes {dimension_semantics = [#tpu.dimension_semantics<arbitrary>], iteration_bounds = array<i64: 2>, scalar_prefetch = 0 : i64, scratch_operands = 1 : i64, tpu.core_type = #tpu.core_type<tc>, window_params = [{transform_indices = @transform_0, window_bounds = array<i64: 8, 512>}, {transform_indices = @transform_1, window_bounds = array<i64: 512, 128>}, {pipeline_mode = #tpu.pipeline_mode<synchronous>, transform_indices = @transform_2, window_bounds = array<i64: 1, 128>}, {pipeline_mode = #tpu.pipeline_mode<synchronous>, transform_indices = @transform_3, window_bounds = array<i64: 128, 128>}, {pipeline_mode = #tpu.pipeline_mode<synchronous>, transform_indices = @transform_4, window_bounds = array<i64: 1, 128>}, {pipeline_mode = #tpu.pipeline_mode<synchronous>, transform_indices = @transform_5, window_bounds = array<i64: 128, 128>}, {pipeline_mode = #tpu.pipeline_mode<synchronous>, transform_indices = @transform_6, window_bounds = array<i64: 1, 128>}, {pipeline_mode = #tpu.pipeline_mode<synchronous>, transform_indices = @transform_7, window_bounds = array<i64: 128, 128>}, {pipeline_mode = #tpu.pipeline_mode<synchronous>, transform_indices = @transform_8, window_bounds = array<i64: 1, 128>}, {pipeline_mode = #tpu.pipeline_mode<synchronous>, transform_indices = @transform_9, window_bounds = array<i64: 1, 128>}, {pipeline_mode = #tpu.pipeline_mode<synchronous>, transform_indices = @transform_10, window_bounds = array<i64: 1, 128>}, {pipeline_mode = #tpu.pipeline_mode<synchronous>, transform_indices = @transform_11, window_bounds = array<i64: 8, 128>}]} {
    %c0_i32 = arith.constant 0 : i32
    %0 = arith.cmpi eq, %arg0, %c0_i32 : i32
    %1 = arith.extui %0 : i1 to i32
    %c0_i32_0 = arith.constant 0 : i32
    %2 = arith.cmpi ne, %1, %c0_i32_0 : i32
    scf.if %2 {
      %cst_9 = arith.constant 0.000000e+00 : f32
      %12 = vector.broadcast %cst_9 : f32 to vector<8x128xf32>
      %c0_10 = arith.constant 0 : index
      %c0_11 = arith.constant 0 : index
      %13 = vector.load %arg13[%c0_10, %c0_11] : memref<8x128xf32, #tpu.memory_space<vmem>>, vector<8x128xf32>
      tpu.vector_store %arg13[%c0_10, %c0_11], %12 {strides = array<i32>} : memref<8x128xf32, #tpu.memory_space<vmem>>, vector<8x128xf32>,
    } else {
    }
    %c0 = arith.constant 0 : index
    %c0_1 = arith.constant 0 : index
    %3 = vector.load %arg13[%c0, %c0_1] : memref<8x128xf32, #tpu.memory_space<vmem>>, vector<8x128xf32>
    %c0_2 = arith.constant 0 : index
    %c0_3 = arith.constant 0 : index
    %4 = vector.load %arg1[%c0_2, %c0_3] : memref<8x512xf32, #tpu.memory_space<vmem>>, vector<8x512xf32>
    %c0_4 = arith.constant 0 : index
    %c0_5 = arith.constant 0 : index
    %5 = vector.load %arg2[%c0_4, %c0_5] : memref<512x128xf32, #tpu.memory_space<vmem>>, vector<512x128xf32>
    %cst = arith.constant dense<0.000000e+00> : vector<8x128xf32>
    %6 = tpu.matmul %4, %5, %cst {dimension_numbers = #tpu.dot_dimension_numbers<[1], [0], [0], [1], [0, 0, 1, 1], [], []>} : vector<8x512xf32>, vector<512x128xf32>, vector<8x128xf32> -> vector<8x128xf32>
    %7 = arith.addf %3, %6 : vector<8x128xf32>
    %c0_6 = arith.constant 0 : index
    %c0_7 = arith.constant 0 : index
    %8 = vector.load %arg13[%c0_6, %c0_7] : memref<8x128xf32, #tpu.memory_space<vmem>>, vector<8x128xf32>
    tpu.vector_store %arg13[%c0_6, %c0_7], %7 {strides = array<i32>} : memref<8x128xf32, #tpu.memory_space<vmem>>, vector<8x128xf32>,
    %c1_i32 = arith.constant 1 : i32
    %9 = arith.cmpi eq, %arg0, %c1_i32 : i32
    %10 = arith.extui %9 : i1 to i32
    %c0_i32_8 = arith.constant 0 : i32
    %11 = arith.cmpi ne, %10, %c0_i32_8 : i32
    scf.if %11 {
      %c0_9 = arith.constant 0 : index
      %c0_10 = arith.constant 0 : index
      %12 = vector.load %arg10[%c0_9, %c0_10] : memref<1x128xf32, #tpu.memory_space<vmem>>, vector<1x128xf32>
      %c0_11 = arith.constant 0 : index
      %c0_12 = arith.constant 0 : index
      %13 = vector.load %arg11[%c0_11, %c0_12] : memref<1x128xf32, #tpu.memory_space<vmem>>, vector<1x128xf32>
      %c0_13 = arith.constant 0 : index
      %c0_14 = arith.constant 0 : index
      %14 = vector.load %arg13[%c0_13, %c0_14] : memref<8x128xf32, #tpu.memory_space<vmem>>, vector<8x128xf32>
      %c0_15 = arith.constant 0 : index
      %c0_16 = arith.constant 0 : index
      %15 = vector.load %arg3[%c0_15, %c0_16] : memref<1x128xf32, #tpu.memory_space<vmem>>, vector<1x128xf32>
      %16 = vector.broadcast %15 : vector<1x128xf32> to vector<8x128xf32>
      %17 = arith.addf %14, %16 : vector<8x128xf32>
      %18 = tpu.iota {dimensions = array<i32: 0>} : vector<8x128xi32>
      %c2_i32 = arith.constant 2 : i32
      %19 = vector.broadcast %c2_i32 : i32 to vector<8x128xi32>
      %20 = arith.cmpi slt, %18, %19 : vector<8x128xi32>
      %cst_17 = arith.constant 0.000000e+00 : f32
      %21 = vector.broadcast %cst_17 : f32 to vector<8x128xf32>
      %22 = arith.select %20, %17, %21 : vector<8x128xi1>, vector<8x128xf32>
      %cst_18 = arith.constant dense<0.000000e+00> : vector<128xf32>
      %23 = vector.multi_reduction <add>, %22, %cst_18 [0] : vector<8x128xf32> to vector<128xf32>
      %24 = vector.shape_cast %23 : vector<128xf32> to vector<1x128xf32>
      %cst_19 = arith.constant 5.000000e-01 : f32
      %25 = vector.broadcast %cst_19 : f32 to vector<1x128xf32>
      %26 = arith.mulf %24, %25 : vector<1x128xf32>
      %27 = arith.mulf %22, %22 : vector<8x128xf32>
      %cst_20 = arith.constant dense<0.000000e+00> : vector<128xf32>
      %28 = vector.multi_reduction <add>, %27, %cst_20 [0] : vector<8x128xf32> to vector<128xf32>
      %29 = vector.shape_cast %28 : vector<128xf32> to vector<1x128xf32>
      %cst_21 = arith.constant 5.000000e-01 : f32
      %30 = vector.broadcast %cst_21 : f32 to vector<1x128xf32>
      %31 = arith.mulf %29, %30 : vector<1x128xf32>
      %32 = arith.mulf %26, %26 : vector<1x128xf32>
      %33 = arith.subf %31, %32 : vector<1x128xf32>
      %cst_22 = arith.constant 0.000000e+00 : f32
      %34 = vector.broadcast %cst_22 : f32 to vector<1x128xf32>
      %35 = arith.maximumf %33, %34 : vector<1x128xf32>
      %36 = vector.broadcast %26 : vector<1x128xf32> to vector<8x128xf32>
      %37 = arith.subf %17, %36 : vector<8x128xf32>
      %cst_23 = arith.constant 9.99999974E-6 : f32
      %38 = vector.broadcast %cst_23 : f32 to vector<1x128xf32>
      %39 = arith.addf %35, %38 : vector<1x128xf32>
      %40 = math.rsqrt %39 : vector<1x128xf32>
      %41 = vector.broadcast %40 : vector<1x128xf32> to vector<8x128xf32>
      %42 = arith.mulf %37, %41 : vector<8x128xf32>
      %43 = vector.broadcast %12 : vector<1x128xf32> to vector<8x128xf32>
      %44 = arith.mulf %42, %43 : vector<8x128xf32>
      %45 = vector.broadcast %13 : vector<1x128xf32> to vector<8x128xf32>
      %46 = arith.addf %44, %45 : vector<8x128xf32>
      %cst_24 = arith.constant 0.000000e+00 : f32
      %47 = vector.broadcast %cst_24 : f32 to vector<8x128xf32>
      %48 = arith.maximumf %46, %47 : vector<8x128xf32>
      %c0_25 = arith.constant 0 : index
      %c0_26 = arith.constant 0 : index
      %49 = vector.load %arg4[%c0_25, %c0_26] : memref<128x128xf32, #tpu.memory_space<vmem>>, vector<128x128xf32>
      %cst_27 = arith.constant dense<0.000000e+00> : vector<8x128xf32>
      %50 = tpu.matmul %48, %49, %cst_27 {dimension_numbers = #tpu.dot_dimension_numbers<[1], [0], [0], [1], [0, 0, 1, 1], [], []>} : vector<8x128xf32>, vector<128x128xf32>, vector<8x128xf32> -> vector<8x128xf32>
      %c0_28 = arith.constant 0 : index
      %c0_29 = arith.constant 0 : index
      %51 = vector.load %arg5[%c0_28, %c0_29] : memref<1x128xf32, #tpu.memory_space<vmem>>, vector<1x128xf32>
      %52 = vector.broadcast %51 : vector<1x128xf32> to vector<8x128xf32>
      %53 = arith.addf %50, %52 : vector<8x128xf32>
      %54 = tpu.iota {dimensions = array<i32: 0>} : vector<8x128xi32>
      %c2_i32_30 = arith.constant 2 : i32
      %55 = vector.broadcast %c2_i32_30 : i32 to vector<8x128xi32>
      %56 = arith.cmpi slt, %54, %55 : vector<8x128xi32>
      %cst_31 = arith.constant 0.000000e+00 : f32
      %57 = vector.broadcast %cst_31 : f32 to vector<8x128xf32>
      %58 = arith.select %56, %53, %57 : vector<8x128xi1>, vector<8x128xf32>
      %cst_32 = arith.constant dense<0.000000e+00> : vector<128xf32>
      %59 = vector.multi_reduction <add>, %58, %cst_32 [0] : vector<8x128xf32> to vector<128xf32>
      %60 = vector.shape_cast %59 : vector<128xf32> to vector<1x128xf32>
      %cst_33 = arith.constant 5.000000e-01 : f32
      %61 = vector.broadcast %cst_33 : f32 to vector<1x128xf32>
      %62 = arith.mulf %60, %61 : vector<1x128xf32>
      %63 = arith.mulf %58, %58 : vector<8x128xf32>
      %cst_34 = arith.constant dense<0.000000e+00> : vector<128xf32>
      %64 = vector.multi_reduction <add>, %63, %cst_34 [0] : vector<8x128xf32> to vector<128xf32>
      %65 = vector.shape_cast %64 : vector<128xf32> to vector<1x128xf32>
      %cst_35 = arith.constant 5.000000e-01 : f32
      %66 = vector.broadcast %cst_35 : f32 to vector<1x128xf32>
      %67 = arith.mulf %65, %66 : vector<1x128xf32>
      %68 = arith.mulf %62, %62 : vector<1x128xf32>
      %69 = arith.subf %67, %68 : vector<1x128xf32>
      %cst_36 = arith.constant 0.000000e+00 : f32
      %70 = vector.broadcast %cst_36 : f32 to vector<1x128xf32>
      %71 = arith.maximumf %69, %70 : vector<1x128xf32>
      %72 = vector.broadcast %62 : vector<1x128xf32> to vector<8x128xf32>
      %73 = arith.subf %53, %72 : vector<8x128xf32>
      %cst_37 = arith.constant 9.99999974E-6 : f32
      %74 = vector.broadcast %cst_37 : f32 to vector<1x128xf32>
      %75 = arith.addf %71, %74 : vector<1x128xf32>
      %76 = math.rsqrt %75 : vector<1x128xf32>
      %77 = vector.broadcast %76 : vector<1x128xf32> to vector<8x128xf32>
      %78 = arith.mulf %73, %77 : vector<8x128xf32>
      %79 = vector.broadcast %12 : vector<1x128xf32> to vector<8x128xf32>
      %80 = arith.mulf %78, %79 : vector<8x128xf32>
      %81 = vector.broadcast %13 : vector<1x128xf32> to vector<8x128xf32>
      %82 = arith.addf %80, %81 : vector<8x128xf32>
      %cst_38 = arith.constant 0.000000e+00 : f32
      %83 = vector.broadcast %cst_38 : f32 to vector<8x128xf32>
      %84 = arith.maximumf %82, %83 : vector<8x128xf32>
      %c0_39 = arith.constant 0 : index
      %c0_40 = arith.constant 0 : index
      %85 = vector.load %arg6[%c0_39, %c0_40] : memref<128x128xf32, #tpu.memory_space<vmem>>, vector<128x128xf32>
      %cst_41 = arith.constant dense<0.000000e+00> : vector<8x128xf32>
      %86 = tpu.matmul %84, %85, %cst_41 {dimension_numbers = #tpu.dot_dimension_numbers<[1], [0], [0], [1], [0, 0, 1, 1], [], []>} : vector<8x128xf32>, vector<128x128xf32>, vector<8x128xf32> -> vector<8x128xf32>
      %c0_42 = arith.constant 0 : index
      %c0_43 = arith.constant 0 : index
      %87 = vector.load %arg7[%c0_42, %c0_43] : memref<1x128xf32, #tpu.memory_space<vmem>>, vector<1x128xf32>
      %88 = vector.broadcast %87 : vector<1x128xf32> to vector<8x128xf32>
      %89 = arith.addf %86, %88 : vector<8x128xf32>
      %90 = tpu.iota {dimensions = array<i32: 0>} : vector<8x128xi32>
      %c2_i32_44 = arith.constant 2 : i32
      %91 = vector.broadcast %c2_i32_44 : i32 to vector<8x128xi32>
      %92 = arith.cmpi slt, %90, %91 : vector<8x128xi32>
      %cst_45 = arith.constant 0.000000e+00 : f32
      %93 = vector.broadcast %cst_45 : f32 to vector<8x128xf32>
      %94 = arith.select %92, %89, %93 : vector<8x128xi1>, vector<8x128xf32>
      %cst_46 = arith.constant dense<0.000000e+00> : vector<128xf32>
      %95 = vector.multi_reduction <add>, %94, %cst_46 [0] : vector<8x128xf32> to vector<128xf32>
      %96 = vector.shape_cast %95 : vector<128xf32> to vector<1x128xf32>
      %cst_47 = arith.constant 5.000000e-01 : f32
      %97 = vector.broadcast %cst_47 : f32 to vector<1x128xf32>
      %98 = arith.mulf %96, %97 : vector<1x128xf32>
      %99 = arith.mulf %94, %94 : vector<8x128xf32>
      %cst_48 = arith.constant dense<0.000000e+00> : vector<128xf32>
      %100 = vector.multi_reduction <add>, %99, %cst_48 [0] : vector<8x128xf32> to vector<128xf32>
      %101 = vector.shape_cast %100 : vector<128xf32> to vector<1x128xf32>
      %cst_49 = arith.constant 5.000000e-01 : f32
      %102 = vector.broadcast %cst_49 : f32 to vector<1x128xf32>
      %103 = arith.mulf %101, %102 : vector<1x128xf32>
      %104 = arith.mulf %98, %98 : vector<1x128xf32>
      %105 = arith.subf %103, %104 : vector<1x128xf32>
      %cst_50 = arith.constant 0.000000e+00 : f32
      %106 = vector.broadcast %cst_50 : f32 to vector<1x128xf32>
      %107 = arith.maximumf %105, %106 : vector<1x128xf32>
      %108 = vector.broadcast %98 : vector<1x128xf32> to vector<8x128xf32>
      %109 = arith.subf %89, %108 : vector<8x128xf32>
      %cst_51 = arith.constant 9.99999974E-6 : f32
      %110 = vector.broadcast %cst_51 : f32 to vector<1x128xf32>
      %111 = arith.addf %107, %110 : vector<1x128xf32>
      %112 = math.rsqrt %111 : vector<1x128xf32>
      %113 = vector.broadcast %112 : vector<1x128xf32> to vector<8x128xf32>
      %114 = arith.mulf %109, %113 : vector<8x128xf32>
      %115 = vector.broadcast %12 : vector<1x128xf32> to vector<8x128xf32>
      %116 = arith.mulf %114, %115 : vector<8x128xf32>
      %117 = vector.broadcast %13 : vector<1x128xf32> to vector<8x128xf32>
      %118 = arith.addf %116, %117 : vector<8x128xf32>
      %cst_52 = arith.constant 0.000000e+00 : f32
      %119 = vector.broadcast %cst_52 : f32 to vector<8x128xf32>
      %120 = arith.maximumf %118, %119 : vector<8x128xf32>
      %c0_53 = arith.constant 0 : index
      %c0_54 = arith.constant 0 : index
      %121 = vector.load %arg8[%c0_53, %c0_54] : memref<128x128xf32, #tpu.memory_space<vmem>>, vector<128x128xf32>
      %cst_55 = arith.constant dense<0.000000e+00> : vector<8x128xf32>
      %122 = tpu.matmul %120, %121, %cst_55 {dimension_numbers = #tpu.dot_dimension_numbers<[1], [0], [0], [1], [0, 0, 1, 1], [], []>} : vector<8x128xf32>, vector<128x128xf32>, vector<8x128xf32> -> vector<8x128xf32>
      %c0_56 = arith.constant 0 : index
      %c0_57 = arith.constant 0 : index
      %123 = vector.load %arg9[%c0_56, %c0_57] : memref<1x128xf32, #tpu.memory_space<vmem>>, vector<1x128xf32>
      %124 = vector.broadcast %123 : vector<1x128xf32> to vector<8x128xf32>
      %125 = arith.addf %122, %124 : vector<8x128xf32>
      %126 = tpu.iota {dimensions = array<i32: 1>} : vector<8x128xi32>
      %c10_i32 = arith.constant 10 : i32
      %127 = vector.broadcast %c10_i32 : i32 to vector<8x128xi32>
      %128 = arith.cmpi slt, %126, %127 : vector<8x128xi32>
      %cst_58 = arith.constant 0xFF800000 : f32
      %129 = vector.broadcast %cst_58 : f32 to vector<8x128xf32>
      %130 = arith.select %128, %125, %129 : vector<8x128xi1>, vector<8x128xf32>
      %cst_59 = arith.constant dense<0xFF800000> : vector<8xf32>
      %131 = vector.multi_reduction <maximumf>, %130, %cst_59 [1] : vector<8x128xf32> to vector<8xf32>
      %132 = vector.shape_cast %131 : vector<8xf32> to vector<8x1xf32>
      %133 = vector.broadcast %132 : vector<8x1xf32> to vector<8x128xf32>
      %134 = arith.subf %130, %133 : vector<8x128xf32>
      %135 = math.exp %134 : vector<8x128xf32>
      %cst_60 = arith.constant dense<0.000000e+00> : vector<8xf32>
      %136 = vector.multi_reduction <add>, %135, %cst_60 [1] : vector<8x128xf32> to vector<8xf32>
      %137 = vector.shape_cast %136 : vector<8xf32> to vector<8x1xf32>
      %138 = math.log %137 : vector<8x1xf32>
      %139 = vector.broadcast %138 : vector<8x1xf32> to vector<8x128xf32>
      %140 = arith.subf %134, %139 : vector<8x128xf32>
      %c0_61 = arith.constant 0 : index
      %c0_62 = arith.constant 0 : index
      %141 = vector.load %arg12[%c0_61, %c0_62] : memref<8x128xf32, #tpu.memory_space<vmem>>, vector<8x128xf32>
      tpu.vector_store %arg12[%c0_61, %c0_62], %140 {strides = array<i32>} : memref<8x128xf32, #tpu.memory_space<vmem>>, vector<8x128xf32>,
    } else {
    }
    return
  }
  func.func @transform_0(%arg0: i32) -> (i32, i32) {
    %c0_i32 = arith.constant 0 : i32
    %c0_i32_0 = arith.constant 0 : i32
    return %c0_i32, %arg0 : i32, i32
  }
  func.func @transform_1(%arg0: i32) -> (i32, i32) {
    %c0_i32 = arith.constant 0 : i32
    %c0_i32_0 = arith.constant 0 : i32
    return %arg0, %c0_i32 : i32, i32
  }
  func.func @transform_2(%arg0: i32) -> (i32, i32) {
    %c0_i32 = arith.constant 0 : i32
    %c0_i32_0 = arith.constant 0 : i32
    %c0_i32_1 = arith.constant 0 : i32
    return %c0_i32, %c0_i32_0 : i32, i32
  }
  func.func @transform_3(%arg0: i32) -> (i32, i32) {
    %c0_i32 = arith.constant 0 : i32
    %c0_i32_0 = arith.constant 0 : i32
    %c0_i32_1 = arith.constant 0 : i32
    return %c0_i32, %c0_i32_0 : i32, i32
  }
  func.func @transform_4(%arg0: i32) -> (i32, i32) {
    %c0_i32 = arith.constant 0 : i32
    %c0_i32_0 = arith.constant 0 : i32
    %c0_i32_1 = arith.constant 0 : i32
    return %c0_i32, %c0_i32_0 : i32, i32
  }
  func.func @transform_5(%arg0: i32) -> (i32, i32) {
    %c0_i32 = arith.constant 0 : i32
    %c0_i32_0 = arith.constant 0 : i32
    %c0_i32_1 = arith.constant 0 : i32
    return %c0_i32, %c0_i32_0 : i32, i32
  }
  func.func @transform_6(%arg0: i32) -> (i32, i32) {
    %c0_i32 = arith.constant 0 : i32
    %c0_i32_0 = arith.constant 0 : i32
    %c0_i32_1 = arith.constant 0 : i32
    return %c0_i32, %c0_i32_0 : i32, i32
  }
  func.func @transform_7(%arg0: i32) -> (i32, i32) {
    %c0_i32 = arith.constant 0 : i32
    %c0_i32_0 = arith.constant 0 : i32
    %c0_i32_1 = arith.constant 0 : i32
    return %c0_i32, %c0_i32_0 : i32, i32
  }
  func.func @transform_8(%arg0: i32) -> (i32, i32) {
    %c0_i32 = arith.constant 0 : i32
    %c0_i32_0 = arith.constant 0 : i32
    %c0_i32_1 = arith.constant 0 : i32
    return %c0_i32, %c0_i32_0 : i32, i32
  }
  func.func @transform_9(%arg0: i32) -> (i32, i32) {
    %c0_i32 = arith.constant 0 : i32
    %c0_i32_0 = arith.constant 0 : i32
    %c0_i32_1 = arith.constant 0 : i32
    return %c0_i32, %c0_i32_0 : i32, i32
  }
  func.func @transform_10(%arg0: i32) -> (i32, i32) {
    %c0_i32 = arith.constant 0 : i32
    %c0_i32_0 = arith.constant 0 : i32
    %c0_i32_1 = arith.constant 0 : i32
    return %c0_i32, %c0_i32_0 : i32, i32
  }
  func.func @transform_11(%arg0: i32) -> (i32, i32) {
    %c0_i32 = arith.constant 0 : i32
    %c0_i32_0 = arith.constant 0 : i32
    %c0_i32_1 = arith.constant 0 : i32
    return %c0_i32, %c0_i32_0 : i32, i32
  }
}

</mosaic_0001>

<llo_original>
// kernel: linear_forward.1
$region0: #{linear_forward.1}
  #allocation0 [shape = 'u32[]', space=smem, size = 0x4, offset = 0x4, fixed_abs, tag = 'smem constant byte address 0x4 - core index']
  #allocation1 [shape = 'u32[144,128]{1,0:T(1,128)}', space=vmem, size = 0x12000, scoped, tag = 'internal scratch']
  #allocation2 [shape = 'f32[8,128]{1,0:T(8,128)}', space=vmem, size = 0x1000, scoped, tag = 'scratch operand']
  %s0 = inlined_call_operand.vmem [shape: f32[8,1024], index: 0, kind: input, shape index: {}]
  %s1 = inlined_call_operand.hbm [shape: f32[1024,128], index: 1, kind: input, shape index: {}]
  %s2 = inlined_call_operand.vmem [shape: f32[1,128], index: 2, kind: input, shape index: {}]
  %s3 = inlined_call_operand.vmem [shape: f32[128,128], index: 3, kind: input, shape index: {}]
  %s4 = inlined_call_operand.vmem [shape: f32[1,128], index: 4, kind: input, shape index: {}]
  %s5 = inlined_call_operand.vmem [shape: f32[128,128], index: 5, kind: input, shape index: {}]
  %s6 = inlined_call_operand.vmem [shape: f32[1,128], index: 6, kind: input, shape index: {}]
  %s7 = inlined_call_operand.hbm [shape: f32[128,128], index: 7, kind: input, shape index: {}]
  %s8 = inlined_call_operand.hbm [shape: f32[1,128], index: 8, kind: input, shape index: {}]
  %s9 = inlined_call_operand.hbm [shape: f32[1,128], index: 9, kind: input, shape index: {}]
  %s10 = inlined_call_operand.hbm [shape: f32[1,128], index: 10, kind: input, shape index: {}]
  %s11 = inlined_call_operand.vmem [shape: f32[8,128], index: 11, kind: output, shape index: {}]
  %s12 = sld [smem:[#allocation0]]
  $region105: #{linear_forward.1} parent=0
    _
  %s14 = ssub.s32 1, %s12
  %s15 = scalar_select 0, %s14, %s12
  $region1: #{linear_forward.1} parent=0
    #allocation3 [shape = 'u8[524288]{0}', space=vmem, size = 0x80000, scoped, tag = 'input window, operand 1']
    #allocation4 [shape = 's32[2]{0}', space=sflag, size = 0x8, scoped, tag = 'scoped memory for linear_forward.1']
    #allocation5 [shape = 'u8[65536]{0}', space=vmem, size = 0x10000, scoped, tag = 'input window, operand 7, single buffered']
    #allocation6 [shape = 's32[1]{0}', space=sflag, size = 0x4, scoped, tag = 'scoped memory for linear_forward.1']
    #allocation7 [shape = 'u8[512]{0}', space=vmem, size = 0x400, scoped, tag = 'input window, operand 8, single buffered']
    #allocation8 [shape = 'u8[512]{0}', space=vmem, size = 0x400, scoped, tag = 'input window, operand 9, single buffered']
    #allocation9 [shape = 's32[1]{0}', space=sflag, size = 0x4, scoped, tag = 'scoped memory for linear_forward.1']
    #allocation10 [shape = 'u8[512]{0}', space=vmem, size = 0x400, scoped, tag = 'input window, operand 10, single buffered']
    %16 = vsyncpa [#allocation4], 0
    %s17 = scalar_lea.sflag [#allocation4], 1
    %18 = vsyncpa %s17, 0
    %19 = vsyncpa [#allocation6], 0
    %20 = vsyncpa [#allocation9], 0
    loop: start=0, step=1, limit=4
    $region2: #{linear_forward.1} parent=1 // loop_pre_header
      _
    $region3: #{linear_forward.1} parent=1 // loop_header
      %s22 = sphi 0, %s26
      %p23 = scmp.ge.s32.totalorder %s22, 4
      %s32 = sphi 0, %s34
      %s35 = sphi 0, %s32
      %s36 = sphi 0, %s35
      %s52 = sphi 0, %s36
      %s58 = sphi 0, %s60
      %s61 = sphi 0, %s58
      %s62 = sphi 0, %s61
      %s78 = sphi 0, %s62
      %s82 = sphi 0, %s82
      %s84 = sphi 0, %s82
      %s85 = sphi 0, %s84
      %s99 = sphi 0, %s85
      %s103 = sphi 0, %s103
      %s105 = sphi 0, %s103
      %s106 = sphi 0, %s105
      %s120 = sphi 0, %s106
      %s124 = sphi 0, %s124
      %s126 = sphi 0, %s124
      %s127 = sphi 0, %s126
      %s141 = sphi 0, %s127
      %s145 = sphi 0, %s145
      %s147 = sphi 0, %s145
      %s148 = sphi 0, %s147
      %s162 = sphi 0, %s148
      %s166 = sphi 0, %s166
      %s168 = sphi 0, %s166
      %s169 = sphi 0, %s168
      %s183 = sphi 0, %s169
      %s187 = sphi 0, %s187
      %s189 = sphi 0, %s187
      %s190 = sphi 0, %s189
      %s204 = sphi 0, %s190
      %s208 = sphi 0, %s208
      %s210 = sphi 0, %s208
      %s211 = sphi 0, %s210
      %s225 = sphi 0, %s211
      %s229 = sphi 0, %s229
      %s231 = sphi 0, %s229
      %s232 = sphi 0, %s231
      %s246 = sphi 0, %s232
      %s250 = sphi 0, %s250
      %s252 = sphi 0, %s250
      %s253 = sphi 0, %s252
      %s267 = sphi 0, %s253
      %s271 = sphi 0, %s271
      %s273 = sphi 0, %s271
      %s274 = sphi 0, %s273
      %s288 = sphi 0, %s274
    $region4: #{linear_forward.1} parent=1 // loop_header_branch
      %25 = sbr.rel (%p23) target = $region8
    $region5: #{linear_forward.1} parent=1 // loop_body
      %s27 = ssub.s32 %s22, 1
      %s28 = ssub.s32 %s22, 2
      %s29 = sadd.s32 %s22, 1
      %s30 = ssub.s32 %s22, %s29
      %p31 = scmp.eq.s32.totalorder %s30, 0
      %s33 = sadd.s32 %s32, 1
      %s34 = scalar_select %p31, %s32, %s33
      %p37 = pneg %p31
      %p38 = scmp.eq.s32.totalorder %s22, 1
      %p39 = por %p37, %p38
      %p40 = scmp.ne.s32.totalorder %s32, %s35
      %p41 = scmp.eq.s32.totalorder %s22, 0
      %p42 = por %p40, %p41
      %p43 = scmp.ne.s32.totalorder %s32, %s35
      %p44 = scmp.eq.s32.totalorder %s27, 1
      %p45 = por %p43, %p44
      %p46 = scmp.ne.s32.totalorder %s35, %s36
      %p47 = scmp.eq.s32.totalorder %s27, 0
      %p48 = por %p46, %p47
      %p49 = scmp.ne.s32.totalorder %s35, %s36
      %p50 = scmp.eq.s32.totalorder %s28, 1
      %p51 = por %p49, %p50
      %p53 = scmp.ne.s32.totalorder %s36, %s52
      %p54 = scmp.eq.s32.totalorder %s28, 0
      %p55 = por %p53, %p54
      %s56 = ssub.s32 %s22, %s29
      %p57 = scmp.eq.s32.totalorder %s56, 0
      %s59 = sadd.s32 %s58, 1
      %s60 = scalar_select %p57, %s58, %s59
      %p63 = pneg %p57
      %p64 = scmp.eq.s32.totalorder %s22, 1
      %p65 = por %p63, %p64
      %p66 = scmp.ne.s32.totalorder %s58, %s61
      %p67 = scmp.eq.s32.totalorder %s22, 0
      %p68 = por %p66, %p67
      %p69 = scmp.ne.s32.totalorder %s58, %s61
      %p70 = scmp.eq.s32.totalorder %s27, 1
      %p71 = por %p69, %p70
      %p72 = scmp.ne.s32.totalorder %s61, %s62
      %p73 = scmp.eq.s32.totalorder %s27, 0
      %p74 = por %p72, %p73
      %p75 = scmp.ne.s32.totalorder %s61, %s62
      %p76 = scmp.eq.s32.totalorder %s28, 1
      %p77 = por %p75, %p76
      %p79 = scmp.ne.s32.totalorder %s62, %s78
      %p80 = scmp.eq.s32.totalorder %s28, 0
      %p81 = por %p79, %p80
      %s83 = sadd.s32 %s82, 1
      %p86 = scmp.eq.s32.totalorder %s22, 1
      %p87 = scmp.ne.s32.totalorder %s82, %s84
      %p88 = scmp.eq.s32.totalorder %s22, 0
      %p89 = por %p87, %p88
      %p90 = scmp.ne.s32.totalorder %s82, %s84
      %p91 = scmp.eq.s32.totalorder %s27, 1
      %p92 = por %p90, %p91
      %p93 = scmp.ne.s32.totalorder %s84, %s85
      %p94 = scmp.eq.s32.totalorder %s27, 0
      %p95 = por %p93, %p94
      %p96 = scmp.ne.s32.totalorder %s84, %s85
      %p97 = scmp.eq.s32.totalorder %s28, 1
      %p98 = por %p96, %p97
      %p100 = scmp.ne.s32.totalorder %s85, %s99
      %p101 = scmp.eq.s32.totalorder %s28, 0
      %p102 = por %p100, %p101
      %s104 = sadd.s32 %s103, 1
      %p107 = scmp.eq.s32.totalorder %s22, 1
      %p108 = scmp.ne.s32.totalorder %s103, %s105
      %p109 = scmp.eq.s32.totalorder %s22, 0
      %p110 = por %p108, %p109
      %p111 = scmp.ne.s32.totalorder %s103, %s105
      %p112 = scmp.eq.s32.totalorder %s27, 1
      %p113 = por %p111, %p112
      %p114 = scmp.ne.s32.totalorder %s105, %s106
      %p115 = scmp.eq.s32.totalorder %s27, 0
      %p116 = por %p114, %p115
      %p117 = scmp.ne.s32.totalorder %s105, %s106
      %p118 = scmp.eq.s32.totalorder %s28, 1
      %p119 = por %p117, %p118
      %p121 = scmp.ne.s32.totalorder %s106, %s120
      %p122 = scmp.eq.s32.totalorder %s28, 0
      %p123 = por %p121, %p122
      %s125 = sadd.s32 %s124, 1
      %p128 = scmp.eq.s32.totalorder %s22, 1
      %p129 = scmp.ne.s32.totalorder %s124, %s126
      %p130 = scmp.eq.s32.totalorder %s22, 0
      %p131 = por %p129, %p130
      %p132 = scmp.ne.s32.totalorder %s124, %s126
      %p133 = scmp.eq.s32.totalorder %s27, 1
      %p134 = por %p132, %p133
      %p135 = scmp.ne.s32.totalorder %s126, %s127
      %p136 = scmp.eq.s32.totalorder %s27, 0
      %p137 = por %p135, %p136
      %p138 = scmp.ne.s32.totalorder %s126, %s127
      %p139 = scmp.eq.s32.totalorder %s28, 1
      %p140 = por %p138, %p139
      %p142 = scmp.ne.s32.totalorder %s127, %s141
      %p143 = scmp.eq.s32.totalorder %s28, 0
      %p144 = por %p142, %p143
      %s146 = sadd.s32 %s145, 1
      %p149 = scmp.eq.s32.totalorder %s22, 1
      %p150 = scmp.ne.s32.totalorder %s145, %s147
      %p151 = scmp.eq.s32.totalorder %s22, 0
      %p152 = por %p150, %p151
      %p153 = scmp.ne.s32.totalorder %s145, %s147
      %p154 = scmp.eq.s32.totalorder %s27, 1
      %p155 = por %p153, %p154
      %p156 = scmp.ne.s32.totalorder %s147, %s148
      %p157 = scmp.eq.s32.totalorder %s27, 0
      %p158 = por %p156, %p157
      %p159 = scmp.ne.s32.totalorder %s147, %s148
      %p160 = scmp.eq.s32.totalorder %s28, 1
      %p161 = por %p159, %p160
      %p163 = scmp.ne.s32.totalorder %s148, %s162
      %p164 = scmp.eq.s32.totalorder %s28, 0
      %p165 = por %p163, %p164
      %s167 = sadd.s32 %s166, 1
      %p170 = scmp.eq.s32.totalorder %s22, 1
      %p171 = scmp.ne.s32.totalorder %s166, %s168
      %p172 = scmp.eq.s32.totalorder %s22, 0
      %p173 = por %p171, %p172
      %p174 = scmp.ne.s32.totalorder %s166, %s168
      %p175 = scmp.eq.s32.totalorder %s27, 1
      %p176 = por %p174, %p175
      %p177 = scmp.ne.s32.totalorder %s168, %s169
      %p178 = scmp.eq.s32.totalorder %s27, 0
      %p179 = por %p177, %p178
      %p180 = scmp.ne.s32.totalorder %s168, %s169
      %p181 = scmp.eq.s32.totalorder %s28, 1
      %p182 = por %p180, %p181
      %p184 = scmp.ne.s32.totalorder %s169, %s183
      %p185 = scmp.eq.s32.totalorder %s28, 0
      %p186 = por %p184, %p185
      %s188 = sadd.s32 %s187, 1
      %p191 = scmp.eq.s32.totalorder %s22, 1
      %p192 = scmp.ne.s32.totalorder %s187, %s189
      %p193 = scmp.eq.s32.totalorder %s22, 0
      %p194 = por %p192, %p193
      %p195 = scmp.ne.s32.totalorder %s187, %s189
      %p196 = scmp.eq.s32.totalorder %s27, 1
      %p197 = por %p195, %p196
      %p198 = scmp.ne.s32.totalorder %s189, %s190
      %p199 = scmp.eq.s32.totalorder %s27, 0
      %p200 = por %p198, %p199
      %p201 = scmp.ne.s32.totalorder %s189, %s190
      %p202 = scmp.eq.s32.totalorder %s28, 1
      %p203 = por %p201, %p202
      %p205 = scmp.ne.s32.totalorder %s190, %s204
      %p206 = scmp.eq.s32.totalorder %s28, 0
      %p207 = por %p205, %p206
      %s209 = sadd.s32 %s208, 1
      %p212 = scmp.eq.s32.totalorder %s22, 1
      %p213 = scmp.ne.s32.totalorder %s208, %s210
      %p214 = scmp.eq.s32.totalorder %s22, 0
      %p215 = por %p213, %p214
      %p216 = scmp.ne.s32.totalorder %s208, %s210
      %p217 = scmp.eq.s32.totalorder %s27, 1
      %p218 = por %p216, %p217
      %p219 = scmp.ne.s32.totalorder %s210, %s211
      %p220 = scmp.eq.s32.totalorder %s27, 0
      %p221 = por %p219, %p220
      %p222 = scmp.ne.s32.totalorder %s210, %s211
      %p223 = scmp.eq.s32.totalorder %s28, 1
      %p224 = por %p222, %p223
      %p226 = scmp.ne.s32.totalorder %s211, %s225
      %p227 = scmp.eq.s32.totalorder %s28, 0
      %p228 = por %p226, %p227
      %s230 = sadd.s32 %s229, 1
      %p233 = scmp.eq.s32.totalorder %s22, 1
      %p234 = scmp.ne.s32.totalorder %s229, %s231
      %p235 = scmp.eq.s32.totalorder %s22, 0
      %p236 = por %p234, %p235
      %p237 = scmp.ne.s32.totalorder %s229, %s231
      %p238 = scmp.eq.s32.totalorder %s27, 1
      %p239 = por %p237, %p238
      %p240 = scmp.ne.s32.totalorder %s231, %s232
      %p241 = scmp.eq.s32.totalorder %s27, 0
      %p242 = por %p240, %p241
      %p243 = scmp.ne.s32.totalorder %s231, %s232
      %p244 = scmp.eq.s32.totalorder %s28, 1
      %p245 = por %p243, %p244
      %p247 = scmp.ne.s32.totalorder %s232, %s246
      %p248 = scmp.eq.s32.totalorder %s28, 0
      %p249 = por %p247, %p248
      %s251 = sadd.s32 %s250, 1
      %p254 = scmp.eq.s32.totalorder %s22, 1
      %p255 = scmp.ne.s32.totalorder %s250, %s252
      %p256 = scmp.eq.s32.totalorder %s22, 0
      %p257 = por %p255, %p256
      %p258 = scmp.ne.s32.totalorder %s250, %s252
      %p259 = scmp.eq.s32.totalorder %s27, 1
      %p260 = por %p258, %p259
      %p261 = scmp.ne.s32.totalorder %s252, %s253
      %p262 = scmp.eq.s32.totalorder %s27, 0
      %p263 = por %p261, %p262
      %p264 = scmp.ne.s32.totalorder %s252, %s253
      %p265 = scmp.eq.s32.totalorder %s28, 1
      %p266 = por %p264, %p265
      %p268 = scmp.ne.s32.totalorder %s253, %s267
      %p269 = scmp.eq.s32.totalorder %s28, 0
      %p270 = por %p268, %p269
      %s272 = sadd.s32 %s271, 1
      %p275 = scmp.eq.s32.totalorder %s22, 1
      %p276 = scmp.ne.s32.totalorder %s271, %s273
      %p277 = scmp.eq.s32.totalorder %s22, 0
      %p278 = por %p276, %p277
      %p279 = scmp.ne.s32.totalorder %s271, %s273
      %p280 = scmp.eq.s32.totalorder %s27, 1
      %p281 = por %p279, %p280
      %p282 = scmp.ne.s32.totalorder %s273, %s274
      %p283 = scmp.eq.s32.totalorder %s27, 0
      %p284 = por %p282, %p283
      %p285 = scmp.ne.s32.totalorder %s273, %s274
      %p286 = scmp.eq.s32.totalorder %s28, 1
      %p287 = por %p285, %p286
      %p289 = scmp.ne.s32.totalorder %s274, %s288
      %p290 = scmp.eq.s32.totalorder %s28, 0
      %p291 = por %p289, %p290
      %p292 = scmp.le.s32.totalorder 1, %s22
      %p293 = scmp.lt.s32.totalorder %s22, 3
      %p294 = pnand %p292, %p293
      %p295 = pneg %p294
      // Predicated region
      $region9: #{linear_forward.1} parent=5 // pred_check
        _
      $region10: #{linear_forward.1} parent=5 // pred_check_branch
        %297 = sbr.rel (%p294) target = $region12
      $region11: #{linear_forward.1} parent=5 // pred_region
        %s298 = ssub.s32 %s22, 1
        // Predicated region
        $region13: #{linear_forward.1} parent=11 // pred_check
          %p299 = pneg %p95
        $region14: #{linear_forward.1} parent=11 // pred_check_branch
          %301 = sbr.rel (%p299) target = $region16
        $region15: #{linear_forward.1} parent=11 // pred_region
          _
        $region16: #{linear_forward.1} parent=11 // pred_fallthru
          _
        // Predicated region
        $region17: #{linear_forward.1} parent=11 // pred_check
          %p302 = pneg %p116
        $region18: #{linear_forward.1} parent=11 // pred_check_branch
          %304 = sbr.rel (%p302) target = $region20
        $region19: #{linear_forward.1} parent=11 // pred_region
          _
        $region20: #{linear_forward.1} parent=11 // pred_fallthru
          _
        // Predicated region
        $region21: #{linear_forward.1} parent=11 // pred_check
          %p305 = pneg %p137
        $region22: #{linear_forward.1} parent=11 // pred_check_branch
          %307 = sbr.rel (%p305) target = $region24
        $region23: #{linear_forward.1} parent=11 // pred_region
          _
        $region24: #{linear_forward.1} parent=11 // pred_fallthru
          _
        // Predicated region
        $region25: #{linear_forward.1} parent=11 // pred_check
          %p308 = pneg %p158
        $region26: #{linear_forward.1} parent=11 // pred_check_branch
          %310 = sbr.rel (%p308) target = $region28
        $region27: #{linear_forward.1} parent=11 // pred_region
          _
        $region28: #{linear_forward.1} parent=11 // pred_fallthru
          _
        // Predicated region
        $region29: #{linear_forward.1} parent=11 // pred_check
          %p311 = pneg %p179
        $region30: #{linear_forward.1} parent=11 // pred_check_branch
          %313 = sbr.rel (%p311) target = $region32
        $region31: #{linear_forward.1} parent=11 // pred_region
          _
        $region32: #{linear_forward.1} parent=11 // pred_fallthru
          _
        // Predicated region
        $region33: #{linear_forward.1} parent=11 // pred_check
          %p314 = pneg %p200
        $region34: #{linear_forward.1} parent=11 // pred_check_branch
          %316 = sbr.rel (%p314) target = $region36
        $region35: #{linear_forward.1} parent=11 // pred_region
          %s318 = ssub.s32 2048, 2048
          %319 = vsyncadd [#allocation6], %s318
          %s320 = sshll.u32 [#allocation5], 4
          %s321 = int_to_ptr.vmem [resolvable:$true] %s320
          %326 = dma.hbm_to_vmem [thread:$0]  %s7, 2048, %s321, [#allocation6], 128, 128, 8
        $region36: #{linear_forward.1} parent=11 // pred_fallthru
          _
        // Predicated region
        $region37: #{linear_forward.1} parent=11 // pred_check
          %p327 = pneg %p221
        $region38: #{linear_forward.1} parent=11 // pred_check_branch
          %329 = sbr.rel (%p327) target = $region40
        $region39: #{linear_forward.1} parent=11 // pred_region
          %s331 = ssub.s32 16, 16
          %332 = vsyncadd [#allocation6], %s331
          %s334 = sshll.u32 [#allocation7], 4
          %s335 = int_to_ptr.vmem [resolvable:$true] %s334
          %337 = dma.hbm_to_vmem [thread:$0]  %s8, 16, %s335, [#allocation6]
        $region40: #{linear_forward.1} parent=11 // pred_fallthru
          _
        // Predicated region
        $region41: #{linear_forward.1} parent=11 // pred_check
          %p338 = pneg %p242
        $region42: #{linear_forward.1} parent=11 // pred_check_branch
          %340 = sbr.rel (%p338) target = $region44
        $region43: #{linear_forward.1} parent=11 // pred_region
          %s342 = ssub.s32 16, 16
          %343 = vsyncadd [#allocation9], %s342
          %s345 = sshll.u32 [#allocation8], 4
          %s346 = int_to_ptr.vmem [resolvable:$true] %s345
          %348 = dma.hbm_to_vmem [thread:$0]  %s9, 16, %s346, [#allocation9]
        $region44: #{linear_forward.1} parent=11 // pred_fallthru
          _
        // Predicated region
        $region45: #{linear_forward.1} parent=11 // pred_check
          %p349 = pneg %p263
        $region46: #{linear_forward.1} parent=11 // pred_check_branch
          %351 = sbr.rel (%p349) target = $region48
        $region47: #{linear_forward.1} parent=11 // pred_region
          %s353 = ssub.s32 16, 16
          %354 = vsyncadd [#allocation9], %s353
          %s356 = sshll.u32 [#allocation10], 4
          %s357 = int_to_ptr.vmem [resolvable:$true] %s356
          %359 = dma.hbm_to_vmem [thread:$0]  %s10, 16, %s357, [#allocation9]
        $region48: #{linear_forward.1} parent=11 // pred_fallthru
          _
      $region12: #{linear_forward.1} parent=5 // pred_fallthru
        _
      %p360 = scmp.lt.s32.totalorder %s22, 2
      // Predicated region
      $region49: #{linear_forward.1} parent=5 // pred_check
        %p361 = pneg %p360
      $region50: #{linear_forward.1} parent=5 // pred_check_branch
        %363 = sbr.rel (%p361) target = $region52
      $region51: #{linear_forward.1} parent=5 // pred_region
        // Predicated region
        $region53: #{linear_forward.1} parent=51 // pred_check
          %p364 = pneg %p42
        $region54: #{linear_forward.1} parent=51 // pred_check_branch
          %366 = sbr.rel (%p364) target = $region56
        $region55: #{linear_forward.1} parent=51 // pred_region
          %s367 = smul.u32 4, %s22
          %p368 = scmp.lt.s32.totalorder %s367, 7
          %s369 = scalar_select %p368, %s367, 7
          %s370 = smul.addr %s369, 8
          %s371 = scalar_lea.vmem %s0, %s370
          %s372 = smul.u32 4, %s22
        $region56: #{linear_forward.1} parent=51 // pred_fallthru
          _
        // Predicated region
        $region57: #{linear_forward.1} parent=51 // pred_check
          %p373 = pneg %p68
        $region58: #{linear_forward.1} parent=51 // pred_check_branch
          %375 = sbr.rel (%p373) target = $region60
        $region59: #{linear_forward.1} parent=51 // pred_region
          %s376 = sand.u32 %s58, 1
          %s377 = scalar_lea.sflag [#allocation4], %s376
          %s378 = sand.u32 %s58, 1
          %s379 = smul.addr %s378, 512
          %s380 = scalar_lea.vmem [#allocation3], %s379
          %s381 = smul.u32 64, %s22
          %s383 = ssub.s32 8192, 8192
          %384 = vsyncadd %s377, %s383
          %s385 = smul.addr %s381, 128
          %s386 = scalar_lea.hbm %s1, %s385
          %s387 = sshll.u32 %s380, 4
          %s388 = int_to_ptr.vmem [resolvable:$true] %s387
          %393 = dma.hbm_to_vmem [thread:$0]  %s386, 8192, %s388, %s377, 128, 128, 8
        $region60: #{linear_forward.1} parent=51 // pred_fallthru
          _
      $region52: #{linear_forward.1} parent=5 // pred_fallthru
        _
      %p394 = scmp.le.s32.totalorder 1, %s22
      %p395 = scmp.lt.s32.totalorder %s22, 3
      %p396 = pnand %p394, %p395
      %p397 = pneg %p396
      // Predicated region
      $region61: #{linear_forward.1} parent=5 // pred_check
        _
      $region62: #{linear_forward.1} parent=5 // pred_check_branch
        %399 = sbr.rel (%p396) target = $region64
      $region63: #{linear_forward.1} parent=5 // pred_region
        %s400 = ssub.s32 %s22, 1
        %s401 = sand.u32 %s61, 1
        %s402 = scalar_lea.sflag [#allocation4], %s401
        %s403 = sand.u32 %s61, 1
        %s404 = smul.addr %s403, 512
        %s405 = scalar_lea.vmem [#allocation3], %s404
        // Predicated region
        $region65: #{linear_forward.1} parent=63 // pred_check
          %p406 = pneg %p74
        $region66: #{linear_forward.1} parent=63 // pred_check_branch
          %408 = sbr.rel (%p406) target = $region68
        $region67: #{linear_forward.1} parent=63 // pred_region
          %409 = dma.done %s402, 8192
        $region68: #{linear_forward.1} parent=63 // pred_fallthru
          _
        // Predicated region
        $region69: #{linear_forward.1} parent=63 // pred_check
          %p410 = pneg %p200
        $region70: #{linear_forward.1} parent=63 // pred_check_branch
          %412 = sbr.rel (%p410) target = $region72
        $region71: #{linear_forward.1} parent=63 // pred_region
          %413 = dma.done [#allocation6], 2048
        $region72: #{linear_forward.1} parent=63 // pred_fallthru
          _
        // Predicated region
        $region73: #{linear_forward.1} parent=63 // pred_check
          %p414 = pneg %p221
        $region74: #{linear_forward.1} parent=63 // pred_check_branch
          %416 = sbr.rel (%p414) target = $region76
        $region75: #{linear_forward.1} parent=63 // pred_region
          %417 = dma.done [#allocation6], 16
        $region76: #{linear_forward.1} parent=63 // pred_fallthru
          _
        // Predicated region
        $region77: #{linear_forward.1} parent=63 // pred_check
          %p418 = pneg %p242
        $region78: #{linear_forward.1} parent=63 // pred_check_branch
          %420 = sbr.rel (%p418) target = $region80
        $region79: #{linear_forward.1} parent=63 // pred_region
          %421 = dma.done [#allocation9], 16
        $region80: #{linear_forward.1} parent=63 // pred_fallthru
          _
        // Predicated region
        $region81: #{linear_forward.1} parent=63 // pred_check
          %p422 = pneg %p263
        $region82: #{linear_forward.1} parent=63 // pred_check_branch
          %424 = sbr.rel (%p422) target = $region84
        $region83: #{linear_forward.1} parent=63 // pred_region
          %425 = dma.done [#allocation9], 16
        $region84: #{linear_forward.1} parent=63 // pred_fallthru
          _
        %s426 = smul.u32 4, %s27
        %p427 = scmp.lt.s32.totalorder %s426, 7
        %s428 = scalar_select %p427, %s426, 7
        %s429 = smul.addr %s428, 8
        %s430 = scalar_lea.vmem %s0, %s429
        %p431 = pneg %p48
        %p432 = pneg %p45
        %s433 = sand.u32 %s61, 1
        %s434 = scalar_lea.sflag [#allocation4], %s433
        %s435 = sand.u32 %s61, 1
        %s436 = smul.addr %s435, 512
        %s437 = scalar_lea.vmem [#allocation3], %s436
        %p438 = pneg %p74
        %p439 = pneg %p71
        %p440 = pneg %p95
        %p441 = pneg %p92
        %p442 = pneg %p116
        %p443 = pneg %p113
        %p444 = pneg %p137
        %p445 = pneg %p134
        %p446 = pneg %p158
        %p447 = pneg %p155
        %p448 = pneg %p179
        %p449 = pneg %p176
        %p450 = pneg %p200
        %p451 = pneg %p197
        %p452 = pneg %p221
        %p453 = pneg %p218
        %p454 = pneg %p242
        %p455 = pneg %p239
        %p456 = pneg %p263
        %p457 = pneg %p260
        %p458 = pneg %p284
        %p459 = pneg %p281
        %s460 = smul.u32 4, %s27
        %p461 = scmp.lt.s32.totalorder %s460, 7
        %s462 = scalar_select %p461, %s460, 7
        %s463 = smul.addr %s462, 8
        %s464 = scalar_lea.vmem %s0, %s463
        %s465 = smul.u32 4, %s27
        %s466 = smul.u32 64, %s27
        %p467 = scmp.eq.s32.totalorder %s27, 0
        // Predicated region
        $region85: #{linear_forward.1} parent=63 // pred_check
          %p468 = pneg %p467
        $region86: #{linear_forward.1} parent=63 // pred_check_branch
          %470 = sbr.rel (%p468) target = $region88
        $region87: #{linear_forward.1} parent=63 // pred_region
          %471 = vst [vmem:[#allocation2] sm:$0xff] 0.0
        $region88: #{linear_forward.1} parent=63 // pred_fallthru
          _
        %v472 = vld [vmem:[#allocation2] sm:$0xff]
        %v473 = vld [vmem:[%s464] sm:$0xff]
        %v474 = vld [vmem:[%s464 + $0x8] sm:$0xff]
        %v475 = vld [vmem:[%s464 + $0x10] sm:$0xff]
        %v476 = vld [vmem:[%s464 + $0x18] sm:$0xff]
        %v477 = vld [vmem:[%s405] sm:$0xff]
        %v478 = vld [vmem:[%s405 + $0x8] sm:$0xff]
        %v479 = vld [vmem:[%s405 + $0x10] sm:$0xff]
        %v480 = vld [vmem:[%s405 + $0x18] sm:$0xff]
        %v481 = vld [vmem:[%s405 + $0x20] sm:$0xff]
        %v482 = vld [vmem:[%s405 + $0x28] sm:$0xff]
        %v483 = vld [vmem:[%s405 + $0x30] sm:$0xff]
        %v484 = vld [vmem:[%s405 + $0x38] sm:$0xff]
        %v485 = vld [vmem:[%s405 + $0x40] sm:$0xff]
        %v486 = vld [vmem:[%s405 + $0x48] sm:$0xff]
        %v487 = vld [vmem:[%s405 + $0x50] sm:$0xff]
        %v488 = vld [vmem:[%s405 + $0x58] sm:$0xff]
        %v489 = vld [vmem:[%s405 + $0x60] sm:$0xff]
        %v490 = vld [vmem:[%s405 + $0x68] sm:$0xff]
        %v491 = vld [vmem:[%s405 + $0x70] sm:$0xff]
        %v492 = vld [vmem:[%s405 + $0x78] sm:$0xff]
        %v493 = vld [vmem:[%s405 + $0x80] sm:$0xff]
        %v494 = vld [vmem:[%s405 + $0x88] sm:$0xff]
        %v495 = vld [vmem:[%s405 + $0x90] sm:$0xff]
        %v496 = vld [vmem:[%s405 + $0x98] sm:$0xff]
        %v497 = vld [vmem:[%s405 + $0xa0] sm:$0xff]
        %v498 = vld [vmem:[%s405 + $0xa8] sm:$0xff]
        %v499 = vld [vmem:[%s405 + $0xb0] sm:$0xff]
        %v500 = vld [vmem:[%s405 + $0xb8] sm:$0xff]
        %v501 = vld [vmem:[%s405 + $0xc0] sm:$0xff]
        %v502 = vld [vmem:[%s405 + $0xc8] sm:$0xff]
        %v503 = vld [vmem:[%s405 + $0xd0] sm:$0xff]
        %v504 = vld [vmem:[%s405 + $0xd8] sm:$0xff]
        %v505 = vld [vmem:[%s405 + $0xe0] sm:$0xff]
        %v506 = vld [vmem:[%s405 + $0xe8] sm:$0xff]
        %v507 = vld [vmem:[%s405 + $0xf0] sm:$0xff]
        %v508 = vld [vmem:[%s405 + $0xf8] sm:$0xff]
        %v509 = vld [vmem:[%s405 + $0x100] sm:$0xff]
        %v510 = vld [vmem:[%s405 + $0x108] sm:$0xff]
        %v511 = vld [vmem:[%s405 + $0x110] sm:$0xff]
        %v512 = vld [vmem:[%s405 + $0x118] sm:$0xff]
        %v513 = vld [vmem:[%s405 + $0x120] sm:$0xff]
        %v514 = vld [vmem:[%s405 + $0x128] sm:$0xff]
        %v515 = vld [vmem:[%s405 + $0x130] sm:$0xff]
        %v516 = vld [vmem:[%s405 + $0x138] sm:$0xff]
        %v517 = vld [vmem:[%s405 + $0x140] sm:$0xff]
        %v518 = vld [vmem:[%s405 + $0x148] sm:$0xff]
        %v519 = vld [vmem:[%s405 + $0x150] sm:$0xff]
        %v520 = vld [vmem:[%s405 + $0x158] sm:$0xff]
        %v521 = vld [vmem:[%s405 + $0x160] sm:$0xff]
        %v522 = vld [vmem:[%s405 + $0x168] sm:$0xff]
        %v523 = vld [vmem:[%s405 + $0x170] sm:$0xff]
        %v524 = vld [vmem:[%s405 + $0x178] sm:$0xff]
        %v525 = vld [vmem:[%s405 + $0x180] sm:$0xff]
        %v526 = vld [vmem:[%s405 + $0x188] sm:$0xff]
        %v527 = vld [vmem:[%s405 + $0x190] sm:$0xff]
        %v528 = vld [vmem:[%s405 + $0x198] sm:$0xff]
        %v529 = vld [vmem:[%s405 + $0x1a0] sm:$0xff]
        %v530 = vld [vmem:[%s405 + $0x1a8] sm:$0xff]
        %v531 = vld [vmem:[%s405 + $0x1b0] sm:$0xff]
        %v532 = vld [vmem:[%s405 + $0x1b8] sm:$0xff]
        %v533 = vld [vmem:[%s405 + $0x1c0] sm:$0xff]
        %v534 = vld [vmem:[%s405 + $0x1c8] sm:$0xff]
        %v535 = vld [vmem:[%s405 + $0x1d0] sm:$0xff]
        %v536 = vld [vmem:[%s405 + $0x1d8] sm:$0xff]
        %v537 = vld [vmem:[%s405 + $0x1e0] sm:$0xff]
        %v538 = vld [vmem:[%s405 + $0x1e8] sm:$0xff]
        %v539 = vld [vmem:[%s405 + $0x1f0] sm:$0xff]
        %v540 = vld [vmem:[%s405 + $0x1f8] sm:$0xff]
        %541 = vmatprep.subr.mxu0 0.0
        %542 = vmatpush1.msra.mxu0 %v477
        %543 = vmatprep.subr.mxu0 0.0
        %544 = vmatpush1.msra.mxu0 %v478
        %545 = vmatprep.subr.mxu0 0.0
        %546 = vmatpush1.msra.mxu0 %v479
        %547 = vmatprep.subr.mxu0 0.0
        %548 = vmatpush1.msra.mxu0 %v480
        %549 = vmatprep.subr.mxu0 0.0
        %550 = vmatpush1.msra.mxu0 %v481
        %551 = vmatprep.subr.mxu0 0.0
        %552 = vmatpush1.msra.mxu0 %v482
        %553 = vmatprep.subr.mxu0 0.0
        %554 = vmatpush1.msra.mxu0 %v483
        %555 = vmatprep.subr.mxu0 0.0
        %556 = vmatpush1.msra.mxu0 %v484
        %557 = vmatprep.subr.mxu0 0.0
        %558 = vmatpush1.msra.mxu0 %v485
        %559 = vmatprep.subr.mxu0 0.0
        %560 = vmatpush1.msra.mxu0 %v486
        %561 = vmatprep.subr.mxu0 0.0
        %562 = vmatpush1.msra.mxu0 %v487
        %563 = vmatprep.subr.mxu0 0.0
        %564 = vmatpush1.msra.mxu0 %v488
        %565 = vmatprep.subr.mxu0 0.0
        %566 = vmatpush1.msra.mxu0 %v489
        %567 = vmatprep.subr.mxu0 0.0
        %568 = vmatpush1.msra.mxu0 %v490
        %569 = vmatprep.subr.mxu0 0.0
        %570 = vmatpush1.msra.mxu0 %v491
        %571 = vmatprep.subr.mxu0 0.0
        %572 = vmatpush1.msra.mxu0 %v492
        %573 = vmatprep.subr.mxu0 0.0
        %574 = vmatpush1.msra.mxu0 %v493
        %575 = vmatprep.subr.mxu0 0.0
        %576 = vmatpush1.msra.mxu0 %v494
        %577 = vmatprep.subr.mxu0 0.0
        %578 = vmatpush1.msra.mxu0 %v495
        %579 = vmatprep.subr.mxu0 0.0
        %580 = vmatpush1.msra.mxu0 %v496
        %581 = vmatprep.subr.mxu0 0.0
        %582 = vmatpush1.msra.mxu0 %v497
        %583 = vmatprep.subr.mxu0 0.0
        %584 = vmatpush1.msra.mxu0 %v498
        %585 = vmatprep.subr.mxu0 0.0
        %586 = vmatpush1.msra.mxu0 %v499
        %587 = vmatprep.subr.mxu0 0.0
        %588 = vmatpush1.msra.mxu0 %v500
        %589 = vmatprep.subr.mxu0 0.0
        %590 = vmatpush1.msra.mxu0 %v501
        %591 = vmatprep.subr.mxu0 0.0
        %592 = vmatpush1.msra.mxu0 %v502
        %593 = vmatprep.subr.mxu0 0.0
        %594 = vmatpush1.msra.mxu0 %v503
        %595 = vmatprep.subr.mxu0 0.0
        %596 = vmatpush1.msra.mxu0 %v504
        %597 = vmatprep.subr.mxu0 0.0
        %598 = vmatpush1.msra.mxu0 %v505
        %599 = vmatprep.subr.mxu0 0.0
        %600 = vmatpush1.msra.mxu0 %v506
        %601 = vmatprep.subr.mxu0 0.0
        %602 = vmatpush1.msra.mxu0 %v507
        %603 = vmatprep.subr.mxu0 0.0
        %604 = vmatpush1.msra.mxu0 %v508
        %605 = vmatprep.mubr.f32.mxu0 %v474
        %606 = vmatmul.mubr.f32.gmra.mrb[0].mxu0 %v473
        %v607 = vpop.f32.mrb[0].mxu0
        %v608 = vadd.f32 0.0, %v607
        %v609 = vpop.f32.mrb[0].mxu0
        %610 = vdwg.mxu0
        %611 = vmatprep.subr.mxu0 0.0
        %612 = vmatpush1.msra.mxu0 %v509
        %613 = vmatprep.subr.mxu0 0.0
        %614 = vmatpush1.msra.mxu0 %v510
        %615 = vmatprep.subr.mxu0 0.0
        %616 = vmatpush1.msra.mxu0 %v511
        %617 = vmatprep.subr.mxu0 0.0
        %618 = vmatpush1.msra.mxu0 %v512
        %619 = vmatprep.subr.mxu0 0.0
        %620 = vmatpush1.msra.mxu0 %v513
        %621 = vmatprep.subr.mxu0 0.0
        %622 = vmatpush1.msra.mxu0 %v514
        %623 = vmatprep.subr.mxu0 0.0
        %624 = vmatpush1.msra.mxu0 %v515
        %625 = vmatprep.subr.mxu0 0.0
        %626 = vmatpush1.msra.mxu0 %v516
        %627 = vmatprep.subr.mxu0 0.0
        %628 = vmatpush1.msra.mxu0 %v517
        %629 = vmatprep.subr.mxu0 0.0
        %630 = vmatpush1.msra.mxu0 %v518
        %631 = vmatprep.subr.mxu0 0.0
        %632 = vmatpush1.msra.mxu0 %v519
        %633 = vmatprep.subr.mxu0 0.0
        %634 = vmatpush1.msra.mxu0 %v520
        %635 = vmatprep.subr.mxu0 0.0
        %636 = vmatpush1.msra.mxu0 %v521
        %637 = vmatprep.subr.mxu0 0.0
        %638 = vmatpush1.msra.mxu0 %v522
        %639 = vmatprep.subr.mxu0 0.0
        %640 = vmatpush1.msra.mxu0 %v523
        %641 = vmatprep.subr.mxu0 0.0
        %642 = vmatpush1.msra.mxu0 %v524
        %643 = vmatprep.subr.mxu0 0.0
        %644 = vmatpush1.msra.mxu0 %v525
        %645 = vmatprep.subr.mxu0 0.0
        %646 = vmatpush1.msra.mxu0 %v526
        %647 = vmatprep.subr.mxu0 0.0
        %648 = vmatpush1.msra.mxu0 %v527
        %649 = vmatprep.subr.mxu0 0.0
        %650 = vmatpush1.msra.mxu0 %v528
        %651 = vmatprep.subr.mxu0 0.0
        %652 = vmatpush1.msra.mxu0 %v529
        %653 = vmatprep.subr.mxu0 0.0
        %654 = vmatpush1.msra.mxu0 %v530
        %655 = vmatprep.subr.mxu0 0.0
        %656 = vmatpush1.msra.mxu0 %v531
        %657 = vmatprep.subr.mxu0 0.0
        %658 = vmatpush1.msra.mxu0 %v532
        %659 = vmatprep.subr.mxu0 0.0
        %660 = vmatpush1.msra.mxu0 %v533
        %661 = vmatprep.subr.mxu0 0.0
        %662 = vmatpush1.msra.mxu0 %v534
        %663 = vmatprep.subr.mxu0 0.0
        %664 = vmatpush1.msra.mxu0 %v535
        %665 = vmatprep.subr.mxu0 0.0
        %666 = vmatpush1.msra.mxu0 %v536
        %667 = vmatprep.subr.mxu0 0.0
        %668 = vmatpush1.msra.mxu0 %v537
        %669 = vmatprep.subr.mxu0 0.0
        %670 = vmatpush1.msra.mxu0 %v538
        %671 = vmatprep.subr.mxu0 0.0
        %672 = vmatpush1.msra.mxu0 %v539
        %673 = vmatprep.subr.mxu0 0.0
        %674 = vmatpush1.msra.mxu0 %v540
        %675 = vmatprep.mubr.f32.mxu0 %v476
        %676 = vmatmul.mubr.f32.gmra.mrb[0].mxu0 %v475
        %v677 = vpop.f32.mrb[0].mxu0
        %v678 = vadd.f32 %v608, %v677
        %v679 = vpop.f32.mrb[0].mxu0
        %680 = vdwg.mxu0
        %v681 = vadd.f32 %v472, %v678
        %682 = vst [vmem:[#allocation2] sm:$0xff] %v681
        %p683 = scmp.eq.s32.totalorder %s27, 1
        // Predicated region
        $region89: #{linear_forward.1} parent=63 // pred_check
          %p684 = pneg %p683
        $region90: #{linear_forward.1} parent=63 // pred_check_branch
          %686 = sbr.rel (%p684) target = $region92
        $region91: #{linear_forward.1} parent=63 // pred_region
          %v687 = vld [vmem:[#allocation8] sm:$0x1]
          %v688 = vld [vmem:[#allocation10] sm:$0x1]
          %v689 = vld [vmem:[#allocation2] sm:$0xff]
          %v690 = vld [vmem:[%s2] sm:$0x1]
          %v692 = vlaneseq
          %v693 = vshrl.u32 %v692, 7
          %v694 = vsub.s32 0, %v693
          %v695 = vrot.slane %v690, %v694
          %v697 = vadd.f32 %v689, %v695
          %v698 = vlaneseq
          %v699 = vshrl.u32 %v698, 7
          %vm700 = vcmp.lt.s32.totalorder %v699, 2
          %v701 = vsel %vm700, %v697, 0.0
          %v702 = vrot.slane %v701, 4
          %v703 = vadd.f32 %v701, %v702
          %v704 = vrot.slane %v703, 2
          %v705 = vadd.f32 %v703, %v704
          %v706 = vrot.slane %v705, 1
          %v707 = vadd.f32 %v705, %v706
          %v708 = vmul.f32 %v707, 0.5
          %v709 = vmul.f32 %v701, %v701
          %v710 = vrot.slane %v709, 4
          %v711 = vadd.f32 %v709, %v710
          %v712 = vrot.slane %v711, 2
          %v713 = vadd.f32 %v711, %v712
          %v714 = vrot.slane %v713, 1
          %v715 = vadd.f32 %v713, %v714
          %v716 = vmul.f32 %v715, 0.5
          %v717 = vmul.f32 %v708, %v708
          %v718 = vsub.f32 %v716, %v717
          %v719 = vmax.f32 %v718, 0.0
          %v720 = vsub.f32 %v697, %v708
          %v721 = vadd.f32 %v719, 1e-05
          %v722 = vrsqrt.pop %v721
          %v723 = vmul.f32 %v720, %v722
          %v725 = vlaneseq
          %v726 = vshrl.u32 %v725, 7
          %v727 = vsub.s32 0, %v726
          %v728 = vrot.slane %v687, %v727
          %v730 = vmul.f32 %v723, %v728
          %v732 = vlaneseq
          %v733 = vshrl.u32 %v732, 7
          %v734 = vsub.s32 0, %v733
          %v735 = vrot.slane %v688, %v734
          %v737 = vadd.f32 %v730, %v735
          %v738 = vmax.f32 %v737, 0.0
          %v739 = vld [vmem:[%s3] sm:$0xff]
          %v740 = vld [vmem:[%s3 + $0x8] sm:$0xff]
          %v741 = vld [vmem:[%s3 + $0x10] sm:$0xff]
          %v742 = vld [vmem:[%s3 + $0x18] sm:$0xff]
          %v743 = vld [vmem:[%s3 + $0x20] sm:$0xff]
          %v744 = vld [vmem:[%s3 + $0x28] sm:$0xff]
          %v745 = vld [vmem:[%s3 + $0x30] sm:$0xff]
          %v746 = vld [vmem:[%s3 + $0x38] sm:$0xff]
          %v747 = vld [vmem:[%s3 + $0x40] sm:$0xff]
          %v748 = vld [vmem:[%s3 + $0x48] sm:$0xff]
          %v749 = vld [vmem:[%s3 + $0x50] sm:$0xff]
          %v750 = vld [vmem:[%s3 + $0x58] sm:$0xff]
          %v751 = vld [vmem:[%s3 + $0x60] sm:$0xff]
          %v752 = vld [vmem:[%s3 + $0x68] sm:$0xff]
          %v753 = vld [vmem:[%s3 + $0x70] sm:$0xff]
          %v754 = vld [vmem:[%s3 + $0x78] sm:$0xff]
          %v755 = vld [vmem:[%s4] sm:$0x1]
          %v757 = vlaneseq
          %v758 = vshrl.u32 %v757, 7
          %v759 = vsub.s32 0, %v758
          %v760 = vrot.slane %v755, %v759
          %762 = vmatprep.subr.mxu0 0.0
          %763 = vmatpush1.msra.mxu0 %v739
          %764 = vmatprep.subr.mxu0 0.0
          %765 = vmatpush1.msra.mxu0 %v740
          %766 = vmatprep.subr.mxu0 0.0
          %767 = vmatpush1.msra.mxu0 %v741
          %768 = vmatprep.subr.mxu0 0.0
          %769 = vmatpush1.msra.mxu0 %v742
          %770 = vmatprep.subr.mxu0 0.0
          %771 = vmatpush1.msra.mxu0 %v743
          %772 = vmatprep.subr.mxu0 0.0
          %773 = vmatpush1.msra.mxu0 %v744
          %774 = vmatprep.subr.mxu0 0.0
          %775 = vmatpush1.msra.mxu0 %v745
          %776 = vmatprep.subr.mxu0 0.0
          %777 = vmatpush1.msra.mxu0 %v746
          %778 = vmatprep.subr.mxu0 0.0
          %779 = vmatpush1.msra.mxu0 %v747
          %780 = vmatprep.subr.mxu0 0.0
          %781 = vmatpush1.msra.mxu0 %v748
          %782 = vmatprep.subr.mxu0 0.0
          %783 = vmatpush1.msra.mxu0 %v749
          %784 = vmatprep.subr.mxu0 0.0
          %785 = vmatpush1.msra.mxu0 %v750
          %786 = vmatprep.subr.mxu0 0.0
          %787 = vmatpush1.msra.mxu0 %v751
          %788 = vmatprep.subr.mxu0 0.0
          %789 = vmatpush1.msra.mxu0 %v752
          %790 = vmatprep.subr.mxu0 0.0
          %791 = vmatpush1.msra.mxu0 %v753
          %792 = vmatprep.subr.mxu0 0.0
          %793 = vmatpush1.msra.mxu0 %v754
          %794 = vmatprep.subr.mxu0 0.0
          %795 = vmatpush1.msra.mxu0 0.0
          %796 = vmatprep.subr.mxu0 0.0
          %797 = vmatpush1.msra.mxu0 0.0
          %798 = vmatprep.subr.mxu0 0.0
          %799 = vmatpush1.msra.mxu0 0.0
          %800 = vmatprep.subr.mxu0 0.0
          %801 = vmatpush1.msra.mxu0 0.0
          %802 = vmatprep.subr.mxu0 0.0
          %803 = vmatpush1.msra.mxu0 0.0
          %804 = vmatprep.subr.mxu0 0.0
          %805 = vmatpush1.msra.mxu0 0.0
          %806 = vmatprep.subr.mxu0 0.0
          %807 = vmatpush1.msra.mxu0 0.0
          %808 = vmatprep.subr.mxu0 0.0
          %809 = vmatpush1.msra.mxu0 0.0
          %810 = vmatprep.subr.mxu0 0.0
          %811 = vmatpush1.msra.mxu0 0.0
          %812 = vmatprep.subr.mxu0 0.0
          %813 = vmatpush1.msra.mxu0 0.0
          %814 = vmatprep.subr.mxu0 0.0
          %815 = vmatpush1.msra.mxu0 0.0
          %816 = vmatprep.subr.mxu0 0.0
          %817 = vmatpush1.msra.mxu0 0.0
          %818 = vmatprep.subr.mxu0 0.0
          %819 = vmatpush1.msra.mxu0 0.0
          %820 = vmatprep.subr.mxu0 0.0
          %821 = vmatpush1.msra.mxu0 0.0
          %822 = vmatprep.subr.mxu0 0.0
          %823 = vmatpush1.msra.mxu0 0.0
          %824 = vmatprep.subr.mxu0 0.0
          %825 = vmatpush1.msra.mxu0 0.0
          %826 = vmatprep.mubr.f32.mxu0 0.0
          %827 = vmatmul.mubr.f32.gmra.mrb[0].mxu0 %v738
          %v828 = vpop.f32.mrb[0].mxu0
          %v829 = vadd.f32 %v760, %v828
          %v830 = vpop.f32.mrb[0].mxu0
          %831 = vdwg.mxu0
          %v832 = vsel %vm700, %v829, 0.0
          %v833 = vrot.slane %v832, 4
          %v834 = vadd.f32 %v832, %v833
          %v835 = vrot.slane %v834, 2
          %v836 = vadd.f32 %v834, %v835
          %v837 = vrot.slane %v836, 1
          %v838 = vadd.f32 %v836, %v837
          %v839 = vmul.f32 %v838, 0.5
          %v840 = vmul.f32 %v832, %v832
          %v841 = vrot.slane %v840, 4
          %v842 = vadd.f32 %v840, %v841
          %v843 = vrot.slane %v842, 2
          %v844 = vadd.f32 %v842, %v843
          %v845 = vrot.slane %v844, 1
          %v846 = vadd.f32 %v844, %v845
          %v847 = vmul.f32 %v846, 0.5
          %v848 = vmul.f32 %v839, %v839
          %v849 = vsub.f32 %v847, %v848
          %v850 = vmax.f32 %v849, 0.0
          %v851 = vsub.f32 %v829, %v839
          %v852 = vadd.f32 %v850, 1e-05
          %v853 = vrsqrt.pop %v852
          %v854 = vmul.f32 %v851, %v853
          %v855 = vmul.f32 %v854, %v728
          %v856 = vadd.f32 %v855, %v735
          %v857 = vmax.f32 %v856, 0.0
          %v858 = vld [vmem:[%s5] sm:$0xff]
          %v859 = vld [vmem:[%s5 + $0x8] sm:$0xff]
          %v860 = vld [vmem:[%s5 + $0x10] sm:$0xff]
          %v861 = vld [vmem:[%s5 + $0x18] sm:$0xff]
          %v862 = vld [vmem:[%s5 + $0x20] sm:$0xff]
          %v863 = vld [vmem:[%s5 + $0x28] sm:$0xff]
          %v864 = vld [vmem:[%s5 + $0x30] sm:$0xff]
          %v865 = vld [vmem:[%s5 + $0x38] sm:$0xff]
          %v866 = vld [vmem:[%s5 + $0x40] sm:$0xff]
          %v867 = vld [vmem:[%s5 + $0x48] sm:$0xff]
          %v868 = vld [vmem:[%s5 + $0x50] sm:$0xff]
          %v869 = vld [vmem:[%s5 + $0x58] sm:$0xff]
          %v870 = vld [vmem:[%s5 + $0x60] sm:$0xff]
          %v871 = vld [vmem:[%s5 + $0x68] sm:$0xff]
          %v872 = vld [vmem:[%s5 + $0x70] sm:$0xff]
          %v873 = vld [vmem:[%s5 + $0x78] sm:$0xff]
          %v874 = vld [vmem:[%s6] sm:$0x1]
          %v876 = vlaneseq
          %v877 = vshrl.u32 %v876, 7
          %v878 = vsub.s32 0, %v877
          %v879 = vrot.slane %v874, %v878
          %881 = vmatprep.subr.mxu0 0.0
          %882 = vmatpush1.msra.mxu0 %v858
          %883 = vmatprep.subr.mxu0 0.0
          %884 = vmatpush1.msra.mxu0 %v859
          %885 = vmatprep.subr.mxu0 0.0
          %886 = vmatpush1.msra.mxu0 %v860
          %887 = vmatprep.subr.mxu0 0.0
          %888 = vmatpush1.msra.mxu0 %v861
          %889 = vmatprep.subr.mxu0 0.0
          %890 = vmatpush1.msra.mxu0 %v862
          %891 = vmatprep.subr.mxu0 0.0
          %892 = vmatpush1.msra.mxu0 %v863
          %893 = vmatprep.subr.mxu0 0.0
          %894 = vmatpush1.msra.mxu0 %v864
          %895 = vmatprep.subr.mxu0 0.0
          %896 = vmatpush1.msra.mxu0 %v865
          %897 = vmatprep.subr.mxu0 0.0
          %898 = vmatpush1.msra.mxu0 %v866
          %899 = vmatprep.subr.mxu0 0.0
          %900 = vmatpush1.msra.mxu0 %v867
          %901 = vmatprep.subr.mxu0 0.0
          %902 = vmatpush1.msra.mxu0 %v868
          %903 = vmatprep.subr.mxu0 0.0
          %904 = vmatpush1.msra.mxu0 %v869
          %905 = vmatprep.subr.mxu0 0.0
          %906 = vmatpush1.msra.mxu0 %v870
          %907 = vmatprep.subr.mxu0 0.0
          %908 = vmatpush1.msra.mxu0 %v871
          %909 = vmatprep.subr.mxu0 0.0
          %910 = vmatpush1.msra.mxu0 %v872
          %911 = vmatprep.subr.mxu0 0.0
          %912 = vmatpush1.msra.mxu0 %v873
          %913 = vmatprep.subr.mxu0 0.0
          %914 = vmatpush1.msra.mxu0 0.0
          %915 = vmatprep.subr.mxu0 0.0
          %916 = vmatpush1.msra.mxu0 0.0
          %917 = vmatprep.subr.mxu0 0.0
          %918 = vmatpush1.msra.mxu0 0.0
          %919 = vmatprep.subr.mxu0 0.0
          %920 = vmatpush1.msra.mxu0 0.0
          %921 = vmatprep.subr.mxu0 0.0
          %922 = vmatpush1.msra.mxu0 0.0
          %923 = vmatprep.subr.mxu0 0.0
          %924 = vmatpush1.msra.mxu0 0.0
          %925 = vmatprep.subr.mxu0 0.0
          %926 = vmatpush1.msra.mxu0 0.0
          %927 = vmatprep.subr.mxu0 0.0
          %928 = vmatpush1.msra.mxu0 0.0
          %929 = vmatprep.subr.mxu0 0.0
          %930 = vmatpush1.msra.mxu0 0.0
          %931 = vmatprep.subr.mxu0 0.0
          %932 = vmatpush1.msra.mxu0 0.0
          %933 = vmatprep.subr.mxu0 0.0
          %934 = vmatpush1.msra.mxu0 0.0
          %935 = vmatprep.subr.mxu0 0.0
          %936 = vmatpush1.msra.mxu0 0.0
          %937 = vmatprep.subr.mxu0 0.0
          %938 = vmatpush1.msra.mxu0 0.0
          %939 = vmatprep.subr.mxu0 0.0
          %940 = vmatpush1.msra.mxu0 0.0
          %941 = vmatprep.subr.mxu0 0.0
          %942 = vmatpush1.msra.mxu0 0.0
          %943 = vmatprep.subr.mxu0 0.0
          %944 = vmatpush1.msra.mxu0 0.0
          %945 = vmatprep.mubr.f32.mxu0 0.0
          %946 = vmatmul.mubr.f32.gmra.mrb[0].mxu0 %v857
          %v947 = vpop.f32.mrb[0].mxu0
          %v948 = vadd.f32 %v879, %v947
          %v949 = vpop.f32.mrb[0].mxu0
          %950 = vdwg.mxu0
          %v951 = vsel %vm700, %v948, 0.0
          %v952 = vrot.slane %v951, 4
          %v953 = vadd.f32 %v951, %v952
          %v954 = vrot.slane %v953, 2
          %v955 = vadd.f32 %v953, %v954
          %v956 = vrot.slane %v955, 1
          %v957 = vadd.f32 %v955, %v956
          %v958 = vmul.f32 %v957, 0.5
          %v959 = vmul.f32 %v951, %v951
          %v960 = vrot.slane %v959, 4
          %v961 = vadd.f32 %v959, %v960
          %v962 = vrot.slane %v961, 2
          %v963 = vadd.f32 %v961, %v962
          %v964 = vrot.slane %v963, 1
          %v965 = vadd.f32 %v963, %v964
          %v966 = vmul.f32 %v965, 0.5
          %v967 = vmul.f32 %v958, %v958
          %v968 = vsub.f32 %v966, %v967
          %v969 = vmax.f32 %v968, 0.0
          %v970 = vsub.f32 %v948, %v958
          %v971 = vadd.f32 %v969, 1e-05
          %v972 = vrsqrt.pop %v971
          %v973 = vmul.f32 %v970, %v972
          %v974 = vmul.f32 %v973, %v728
          %v975 = vadd.f32 %v974, %v735
          %v976 = vmax.f32 %v975, 0.0
          %v977 = vld [vmem:[#allocation5] sm:$0xff]
          %v978 = vld [vmem:[#allocation5 + $0x8] sm:$0xff]
          %v979 = vld [vmem:[#allocation5 + $0x10] sm:$0xff]
          %v980 = vld [vmem:[#allocation5 + $0x18] sm:$0xff]
          %v981 = vld [vmem:[#allocation5 + $0x20] sm:$0xff]
          %v982 = vld [vmem:[#allocation5 + $0x28] sm:$0xff]
          %v983 = vld [vmem:[#allocation5 + $0x30] sm:$0xff]
          %v984 = vld [vmem:[#allocation5 + $0x38] sm:$0xff]
          %v985 = vld [vmem:[#allocation5 + $0x40] sm:$0xff]
          %v986 = vld [vmem:[#allocation5 + $0x48] sm:$0xff]
          %v987 = vld [vmem:[#allocation5 + $0x50] sm:$0xff]
          %v988 = vld [vmem:[#allocation5 + $0x58] sm:$0xff]
          %v989 = vld [vmem:[#allocation5 + $0x60] sm:$0xff]
          %v990 = vld [vmem:[#allocation5 + $0x68] sm:$0xff]
          %v991 = vld [vmem:[#allocation5 + $0x70] sm:$0xff]
          %v992 = vld [vmem:[#allocation5 + $0x78] sm:$0xff]
          %v993 = vld [vmem:[#allocation7] sm:$0x1]
          %v995 = vlaneseq
          %v996 = vshrl.u32 %v995, 7
          %v997 = vsub.s32 0, %v996
          %v998 = vrot.slane %v993, %v997
          %1000 = vmatprep.subr.mxu0 0.0
          %1001 = vmatpush1.msra.mxu0 %v977
          %1002 = vmatprep.subr.mxu0 0.0
          %1003 = vmatpush1.msra.mxu0 %v978
          %1004 = vmatprep.subr.mxu0 0.0
          %1005 = vmatpush1.msra.mxu0 %v979
          %1006 = vmatprep.subr.mxu0 0.0
          %1007 = vmatpush1.msra.mxu0 %v980
          %1008 = vmatprep.subr.mxu0 0.0
          %1009 = vmatpush1.msra.mxu0 %v981
          %1010 = vmatprep.subr.mxu0 0.0
          %1011 = vmatpush1.msra.mxu0 %v982
          %1012 = vmatprep.subr.mxu0 0.0
          %1013 = vmatpush1.msra.mxu0 %v983
          %1014 = vmatprep.subr.mxu0 0.0
          %1015 = vmatpush1.msra.mxu0 %v984
          %1016 = vmatprep.subr.mxu0 0.0
          %1017 = vmatpush1.msra.mxu0 %v985
          %1018 = vmatprep.subr.mxu0 0.0
          %1019 = vmatpush1.msra.mxu0 %v986
          %1020 = vmatprep.subr.mxu0 0.0
          %1021 = vmatpush1.msra.mxu0 %v987
          %1022 = vmatprep.subr.mxu0 0.0
          %1023 = vmatpush1.msra.mxu0 %v988
          %1024 = vmatprep.subr.mxu0 0.0
          %1025 = vmatpush1.msra.mxu0 %v989
          %1026 = vmatprep.subr.mxu0 0.0
          %1027 = vmatpush1.msra.mxu0 %v990
          %1028 = vmatprep.subr.mxu0 0.0
          %1029 = vmatpush1.msra.mxu0 %v991
          %1030 = vmatprep.subr.mxu0 0.0
          %1031 = vmatpush1.msra.mxu0 %v992
          %1032 = vmatprep.subr.mxu0 0.0
          %1033 = vmatpush1.msra.mxu0 0.0
          %1034 = vmatprep.subr.mxu0 0.0
          %1035 = vmatpush1.msra.mxu0 0.0
          %1036 = vmatprep.subr.mxu0 0.0
          %1037 = vmatpush1.msra.mxu0 0.0
          %1038 = vmatprep.subr.mxu0 0.0
          %1039 = vmatpush1.msra.mxu0 0.0
          %1040 = vmatprep.subr.mxu0 0.0
          %1041 = vmatpush1.msra.mxu0 0.0
          %1042 = vmatprep.subr.mxu0 0.0
          %1043 = vmatpush1.msra.mxu0 0.0
          %1044 = vmatprep.subr.mxu0 0.0
          %1045 = vmatpush1.msra.mxu0 0.0
          %1046 = vmatprep.subr.mxu0 0.0
          %1047 = vmatpush1.msra.mxu0 0.0
          %1048 = vmatprep.subr.mxu0 0.0
          %1049 = vmatpush1.msra.mxu0 0.0
          %1050 = vmatprep.subr.mxu0 0.0
          %1051 = vmatpush1.msra.mxu0 0.0
          %1052 = vmatprep.subr.mxu0 0.0
          %1053 = vmatpush1.msra.mxu0 0.0
          %1054 = vmatprep.subr.mxu0 0.0
          %1055 = vmatpush1.msra.mxu0 0.0
          %1056 = vmatprep.subr.mxu0 0.0
          %1057 = vmatpush1.msra.mxu0 0.0
          %1058 = vmatprep.subr.mxu0 0.0
          %1059 = vmatpush1.msra.mxu0 0.0
          %1060 = vmatprep.subr.mxu0 0.0
          %1061 = vmatpush1.msra.mxu0 0.0
          %1062 = vmatprep.subr.mxu0 0.0
          %1063 = vmatpush1.msra.mxu0 0.0
          %1064 = vmatprep.mubr.f32.mxu0 0.0
          %1065 = vmatmul.mubr.f32.gmra.mrb[0].mxu0 %v976
          %v1066 = vpop.f32.mrb[0].mxu0
          %v1067 = vadd.f32 %v998, %v1066
          %v1068 = vpop.f32.mrb[0].mxu0
          %1069 = vdwg.mxu0
          %v1070 = vlaneseq
          %v1071 = vand.u32 %v1070, 127
          %vm1072 = vcmp.lt.s32.totalorder %v1071, 10
          %v1073 = vsel %vm1072, %v1067, -inf
          %1074 = vmax.xlane.f32.xlu0 %v1073
          %v1075 = vpop.xlane.xlu0 %1074
          %v1076 = vsub.f32 %v1073, %v1075
          %v1077 = vmul.f32 %v1076, 1.442695
          %v1078 = vpow.pop %v1077
          %1079 = vadd.xlane.f32.xlu0 %v1078
          %v1080 = vpop.xlane.xlu0 %1079
          %v1081 = vlog2.pop %v1080
          %v1082 = vmul.f32 %v1081, 0.6931472
          %v1083 = vsub.f32 %v1076, %v1082
          %1084 = vst [vmem:[%s11] sm:$0xff] %v1083
        $region92: #{linear_forward.1} parent=63 // pred_fallthru
          _
        // Predicated region
        $region93: #{linear_forward.1} parent=63 // pred_check
          %p1085 = pneg %p281
        $region94: #{linear_forward.1} parent=63 // pred_check_branch
          %1087 = sbr.rel (%p1085) target = $region96
        $region95: #{linear_forward.1} parent=63 // pred_region
          _
        $region96: #{linear_forward.1} parent=63 // pred_fallthru
          _
        // Predicated region
        $region97: #{linear_forward.1} parent=63 // pred_check
          %p1088 = pneg %p281
        $region98: #{linear_forward.1} parent=63 // pred_check_branch
          %1090 = sbr.rel (%p1088) target = $region100
        $region99: #{linear_forward.1} parent=63 // pred_region
          _
        $region100: #{linear_forward.1} parent=63 // pred_fallthru
          _
      $region64: #{linear_forward.1} parent=5 // pred_fallthru
        _
      %p1091 = scmp.le.s32.totalorder 2, %s22
      // Predicated region
      $region101: #{linear_forward.1} parent=5 // pred_check
        %p1092 = pneg %p1091
      $region102: #{linear_forward.1} parent=5 // pred_check_branch
        %1094 = sbr.rel (%p1092) target = $region104
      $region103: #{linear_forward.1} parent=5 // pred_region
        %s1095 = ssub.s32 %s22, 2
      $region104: #{linear_forward.1} parent=5 // pred_fallthru
        _
    $region6: #{linear_forward.1} parent=1 // loop_footer
      %s26 = sadd.s32 1, %s22
    $region7: #{linear_forward.1} parent=1 // loop_footer_branch
      %21 = sbr.rel target = $region3
    $region8: #{linear_forward.1} parent=1 // loop_exit
      _
    %1096 = vsyncpa [#allocation4], 1
    %s1097 = scalar_lea.sflag [#allocation4], 1
    %1098 = vsyncpa %s1097, 1
    %1099 = vsyncpa [#allocation6], 1
    %1100 = vsyncpa [#allocation9], 1

</llo_original>
